<compile_context>
chip_gen: v6e
topology: v6e:2x2x1
jax: 0.10.0
libtpu: 0.0.40
codegen_flags: <defaults>
</compile_context>

<pallas_src>
import functools

import jax
import jax.numpy as jnp
from jax.experimental import pallas as pl
from jax.experimental.pallas import tpu as pltpu

LEAKY_SLOPE = 0.01          # nn.LeakyReLU() default negative_slope
BN_EPS = 1e-5               # nn.BatchNorm2d default eps


def _leaky(v):
    return jnp.where(v > 0, v, LEAKY_SLOPE * v)


def _round_up(x, m):
    return (x + m - 1) // m * m


def _vmem_limit_bytes():
    """Generation-aware VMEM limit (~3/4 of physical), with a safe fallback."""
    try:
        cap = int(pltpu.get_tpu_info().vmem_capacity_bytes)
    except Exception:
        cap = 64 * 1024 * 1024
    return max(32 * 1024 * 1024, cap * 3 // 4)


def _geometry(H, W):
    """Wide-layout geometry shared by all three stages."""
    Wpad = W + 4                               # room for the dil=2 halo per row
    LW = H * Wpad                              # wide activation length per image
    q0 = _round_up(2 * Wpad + 2, 128)          # lane-aligned interior start
    flat = _round_up(q0 + LW + 2 * Wpad + 2, 128)   # frame scratch lanes
    return Wpad, LW, q0, flat


def _conv3x3_wide(frame_ref, w_ref, dil, q0, LW, Wpad):
    """3x3 conv (dilation=pad=dil) over the wide bf16 frame scratch.

    Nine accumulated K=C MXU matmuls against statically lane-shifted flat views
    of the frame; nothing is materialized besides the f32 accumulator.
    """
    acc = None
    for t in range(9):
        i, j = divmod(t, 3)
        s = q0 + dil * (i - 1) * Wpad + dil * (j - 1)
        part = jnp.dot(w_ref[t], frame_ref[:, s:s + LW],
                       preferred_element_type=jnp.float32)
        acc = part if acc is None else acc + part
    return acc


def _zero_margins(frame_ref, q0, LW):
    """Zero the (tiny) halo margins; the interior is fully rewritten each step."""
    C, flat = frame_ref.shape
    frame_ref[:, 0:q0] = jnp.zeros((C, q0), jnp.bfloat16)
    frame_ref[:, q0 + LW:flat] = jnp.zeros((C, flat - q0 - LW), jnp.bfloat16)


def _stage1_kernel(x_ref, mask_ref, w1_ref, b1_ref, w2_ref, b2_ref,
                   sc_ref, ra_ref, st_ref, frame_ref, *, q0, LW, Wpad):
    """conv1(1x1)+LeakyReLU -> conv2(3x3,pad=1)+LeakyReLU + BN1 partial stats."""
    mask = mask_ref[...]                                        # (1, LW), 1 on valid lanes
    _zero_margins(frame_ref, q0, LW)

    # conv1 (1x1): one lane-dense MXU matmul on the wide layout.
    x = x_ref[0].astype(jnp.bfloat16)                           # (Cin, LW)
    sc = _leaky(jnp.dot(w1_ref[...], x, preferred_element_type=jnp.float32)
                + b1_ref[...]) * mask
    sc_ref[0] = sc.astype(jnp.bfloat16)

    # Fill the frame interior (mask zeros the junk lanes, which double as the
    # zero borders between rows), then conv2 as 9 shifted-view matmuls.
    frame_ref[:, q0:q0 + LW] = sc.astype(jnp.bfloat16)
    ra = _leaky(_conv3x3_wide(frame_ref, w2_ref, 1, q0, LW, Wpad)
                + b2_ref[...]) * mask
    ra_ref[0] = ra.astype(jnp.bfloat16)

    # One-pass per-image BN1 partials in f32 (junk lanes are exact zeros).
    st_ref[0] = jnp.concatenate(
        [jnp.sum(ra, axis=1, keepdims=True),
         jnp.sum(ra * ra, axis=1, keepdims=True)], axis=1)


def _stage2_kernel(ra_ref, mask_ref, s1_ref, t1_ref, w3_ref, b3_ref,
                   p2_ref, st_ref, frame_ref, *, q0, LW, Wpad):
    """BN1 (folded affine) -> conv3(3x3,dil=2,pad=2)+LeakyReLU + BN2 partials."""
    mask = mask_ref[...]
    _zero_margins(frame_ref, q0, LW)

    # BN1 folded into a per-channel affine; re-mask so the inter-row border
    # lanes written into the frame stay exactly zero.
    ra1 = (ra_ref[0].astype(jnp.float32) * s1_ref[...] + t1_ref[...]) * mask
    frame_ref[:, q0:q0 + LW] = ra1.astype(jnp.bfloat16)

    p2 = _leaky(_conv3x3_wide(frame_ref, w3_ref, 2, q0, LW, Wpad)
                + b3_ref[...]) * mask
    p2_ref[0] = p2.astype(jnp.bfloat16)

    st_ref[0] = jnp.concatenate(
        [jnp.sum(p2, axis=1, keepdims=True),
         jnp.sum(p2 * p2, axis=1, keepdims=True)], axis=1)


def _stage3_kernel(sc_ref, p2_ref, s2_ref, t2_ref, o_ref):
    """output = shortcut + BN2(resA) with BN2 folded into a per-channel affine."""
    o_ref[0] = (sc_ref[0].astype(jnp.float32)
                + p2_ref[0].astype(jnp.float32) * s2_ref[...] + t2_ref[...])


def res_context_block(x_nchw, params):
    """ResContextBlock forward. NCHW in, NCHW out (matches the PyTorch module)."""
    w1, b1, w2, b2, g1, be1, w3, b3, g2, be2 = params
    B, Cin, H, W = x_nchw.shape
    Cout = w1.shape[-1]
    Wpad, LW, q0, flat = _geometry(H, W)
    cnt = float(B * H * W)

    # Wide lane-dense layout: NCHW already has channels leading, so this is a
    # zero-pad of the row axis plus a reshape (no transposes).
    x_wide = jnp.pad(x_nchw.astype(jnp.float32),
                     ((0, 0), (0, 0), (0, 0), (0, Wpad - W))).reshape(B, Cin, LW)
    mask = jnp.pad(jnp.ones((1, 1, H, W), jnp.float32),
                   ((0, 0), (0, 0), (0, 0), (0, Wpad - W))).reshape(1, LW)

    # Weights packed for the transposed layout; bf16 MXU operands.
    w1m = jnp.asarray(w1, jnp.float32).T.astype(jnp.bfloat16)             # (Cout, Cin)
    w2m = (jnp.asarray(w2, jnp.float32).reshape(9, Cout, Cout)
           .transpose(0, 2, 1).astype(jnp.bfloat16))                      # (9, Cout, Cin)
    w3m = (jnp.asarray(w3, jnp.float32).reshape(9, Cout, Cout)
           .transpose(0, 2, 1).astype(jnp.bfloat16))
    col = lambda v: jnp.asarray(v, jnp.float32).reshape(-1, 1)            # (Cout, 1)

    cparams = pltpu.CompilerParams(
        dimension_semantics=("parallel",), vmem_limit_bytes=_vmem_limit_bytes())

    # TODO(synk): for full-resolution SalsaNext inputs (64x2048) additionally
    # tile H into row blocks with a 1-row (conv2) / 2-row (conv3) halo to bound
    # VMEM on v7x, and batch several small images per grid step (>=2048 lanes)
    # when H*W is tiny; at the tested shapes neither is needed.

    # ---- stage 1: conv1 + conv2 (+ BN1 partial stats), grid over batch -------
    sc, ra, st1 = pl.pallas_call(
        functools.partial(_stage1_kernel, q0=q0, LW=LW, Wpad=Wpad),
        grid=(B,),
        in_specs=[
            pl.BlockSpec((1, Cin, LW), lambda b: (b, 0, 0)),
            pl.BlockSpec((1, LW), lambda b: (0, 0)),
            pl.BlockSpec((Cout, Cin), lambda b: (0, 0)),
            pl.BlockSpec((Cout, 1), lambda b: (0, 0)),
            pl.BlockSpec((9, Cout, Cout), lambda b: (0, 0, 0)),
            pl.BlockSpec((Cout, 1), lambda b: (0, 0)),
        ],
        out_specs=[
            pl.BlockSpec((1, Cout, LW), lambda b: (b, 0, 0)),
            pl.BlockSpec((1, Cout, LW), lambda b: (b, 0, 0)),
            pl.BlockSpec((1, Cout, 2), lambda b: (b, 0, 0)),
        ],
        out_shape=[
            jax.ShapeDtypeStruct((B, Cout, LW), jnp.bfloat16),   # shortcut (wide)
            jax.ShapeDtypeStruct((B, Cout, LW), jnp.bfloat16),   # resA pre-BN1 (wide)
            jax.ShapeDtypeStruct((B, Cout, 2), jnp.float32),     # [sum, sumsq]
        ],
        scratch_shapes=[pltpu.VMEM((Cout, flat), jnp.bfloat16)],
        compiler_params=cparams,
    )(x_wide, mask, w1m, col(b1), w2m, col(b2))

    # ---- tiny JAX glue: global BN stats -> per-channel affine ---------------
    def bn_affine(st, gamma, beta):
        s = jnp.sum(st[:, :, 0], axis=0)
        ss = jnp.sum(st[:, :, 1], axis=0)
        mean = s / cnt
        var = jnp.maximum(ss / cnt - mean * mean, 0.0)     # one-pass, biased var
        scale = jnp.asarray(gamma, jnp.float32) * jax.lax.rsqrt(var + BN_EPS)
        shift = jnp.asarray(beta, jnp.float32) - mean * scale
        return scale.reshape(Cout, 1), shift.reshape(Cout, 1)

    s1, t1 = bn_affine(st1, g1, be1)

    # ---- stage 2: BN1-affine + conv3 (+ BN2 partial stats) -------------------
    p2, st2 = pl.pallas_call(
        functools.partial(_stage2_kernel, q0=q0, LW=LW, Wpad=Wpad),
        grid=(B,),
        in_specs=[
            pl.BlockSpec((1, Cout, LW), lambda b: (b, 0, 0)),
            pl.BlockSpec((1, LW), lambda b: (0, 0)),
            pl.BlockSpec((Cout, 1), lambda b: (0, 0)),
            pl.BlockSpec((Cout, 1), lambda b: (0, 0)),
            pl.BlockSpec((9, Cout, Cout), lambda b: (0, 0, 0)),
            pl.BlockSpec((Cout, 1), lambda b: (0, 0)),
        ],
        out_specs=[
            pl.BlockSpec((1, Cout, LW), lambda b: (b, 0, 0)),
            pl.BlockSpec((1, Cout, 2), lambda b: (b, 0, 0)),
        ],
        out_shape=[
            jax.ShapeDtypeStruct((B, Cout, LW), jnp.bfloat16),   # leaky(conv3(resA1))
            jax.ShapeDtypeStruct((B, Cout, 2), jnp.float32),
        ],
        scratch_shapes=[pltpu.VMEM((Cout, flat), jnp.bfloat16)],
        compiler_params=cparams,
    )(ra, mask, s1, t1, w3m, col(b3))

    s2, t2 = bn_affine(st2, g2, be2)

    # ---- stage 3: output = shortcut + BN2(resA), full per-image lane blocks --
    out = pl.pallas_call(
        _stage3_kernel,
        grid=(B,),
        in_specs=[
            pl.BlockSpec((1, Cout, LW), lambda b: (b, 0, 0)),
            pl.BlockSpec((1, Cout, LW), lambda b: (b, 0, 0)),
            pl.BlockSpec((Cout, 1), lambda b: (0, 0)),
            pl.BlockSpec((Cout, 1), lambda b: (0, 0)),
        ],
        out_specs=pl.BlockSpec((1, Cout, LW), lambda b: (b, 0, 0)),
        out_shape=jax.ShapeDtypeStruct((B, Cout, LW), jnp.float32),
        compiler_params=cparams,
    )(sc, p2, s2, t2)

    # Drop the 4 zero/junk lanes per row (cheap XLA slice outside the kernels).
    return out.reshape(B, Cout, H, Wpad)[:, :, :, :W]


def init_params(key, in_filters, out_filters):
    """Deterministic, PyTorch-Conv2d-style (U(-1/sqrt(fan_in), 1/sqrt(fan_in)))."""
    ks = jax.random.split(key, 10)

    def conv_init(kw, kb, kh, kww, cin, cout):
        fan_in = cin * kh * kww
        bound = 1.0 / (fan_in ** 0.5)
        if kh == 1 and kww == 1:
            w = jax.random.uniform(kw, (cin, cout), jnp.float32, -bound, bound)
        else:
            w = jax.random.uniform(kw, (kh, kww, cin, cout), jnp.float32,
                                   -bound, bound)
        b = jax.random.uniform(kb, (cout,), jnp.float32, -bound, bound)
        return w, b

    w1, b1 = conv_init(ks[0], ks[1], 1, 1, in_filters, out_filters)
    w2, b2 = conv_init(ks[2], ks[3], 3, 3, out_filters, out_filters)
    w3, b3 = conv_init(ks[4], ks[5], 3, 3, out_filters, out_filters)
    g1 = 1.0 + 0.1 * jax.random.normal(ks[6], (out_filters,), jnp.float32)
    be1 = 0.1 * jax.random.normal(ks[7], (out_filters,), jnp.float32)
    g2 = 1.0 + 0.1 * jax.random.normal(ks[8], (out_filters,), jnp.float32)
    be2 = 0.1 * jax.random.normal(ks[9], (out_filters,), jnp.float32)
    return (w1, b1, w2, b2, g1, be1, w3, b3, g2, be2)


def ref_forward(x_nchw, params):
    """Pure-JAX f32 reference of the PyTorch forward (silent sanity check)."""
    w1, b1, w2, b2, g1, be1, w3, b3, g2, be2 = params
    x = jnp.transpose(x_nchw, (0, 2, 3, 1))
    dn = ('NHWC', 'HWIO', 'NHWC')

    def conv(v, w, b, dil, pad):
        y = jax.lax.conv_general_dilated(
            v, w, (1, 1), [(pad, pad), (pad, pad)],
            rhs_dilation=(dil, dil), dimension_numbers=dn)
        return y + b

    def leaky(v):
        return jnp.where(v > 0, v, LEAKY_SLOPE * v)

    def bn(v, g, be):
        mean = jnp.mean(v, axis=(0, 1, 2), keepdims=True)
        var = jnp.mean((v - mean) ** 2, axis=(0, 1, 2), keepdims=True)
        return (v - mean) / jnp.sqrt(var + BN_EPS) * g + be

    cin, cout = w1.shape
    shortcut = leaky(conv(x, w1.reshape(1, 1, cin, cout), b1, 1, 0))
    resA = leaky(conv(shortcut, w2, b2, 1, 1))
    resA1 = bn(resA, g1, be1)
    resA = leaky(conv(resA1, w3, b3, 2, 2))
    resA2 = bn(resA, g2, be2)
    return jnp.transpose(shortcut + resA2, (0, 3, 1, 2))


if __name__ == "__main__":
    key = jax.random.PRNGKey(0)
    k_x, k_p = jax.random.split(key)

    B, Cin, Cout, H, W = 2, 4, 8, 16, 16
    x = jax.random.normal(k_x, (B, Cin, H, W), jnp.float32)      # NCHW input
    params = init_params(k_p, Cin, Cout)

    out = jax.block_until_ready(res_context_block(x, params))

    ref = ref_forward(x, params)
    assert out.shape == (B, Cout, H, W)
    # Tolerance covers bf16 MXU operands (f32 accumulation) plus bf16 storage of
    # the HBM intermediates through two conv+BN stages; real layout/shift bugs
    # would show up as O(1) errors, far above this bound.
    max_err = float(jnp.max(jnp.abs(out - ref)))
    assert max_err < 1e-1, f"max abs err too large: {max_err}"

    print("KERNEL_OK")
</pallas_src>

<mosaic_0001>
module attributes {stable_mosaic.version = 11 : i64} {
  func.func @_stage1_kernel(%arg0: i32, %arg1: memref<1x4x320xf32, #tpu.memory_space<vmem>>, %arg2: memref<1x320xf32, #tpu.memory_space<vmem>>, %arg3: memref<8x4xbf16, #tpu.memory_space<vmem>>, %arg4: memref<8x1xf32, #tpu.memory_space<vmem>>, %arg5: memref<9x8x8xbf16, #tpu.memory_space<vmem>>, %arg6: memref<8x1xf32, #tpu.memory_space<vmem>>, %arg7: memref<1x8x320xbf16, #tpu.memory_space<vmem>>, %arg8: memref<1x8x320xbf16, #tpu.memory_space<vmem>>, %arg9: memref<1x8x2xf32, #tpu.memory_space<vmem>>, %arg10: memref<8x512xbf16, #tpu.memory_space<vmem>>) attributes {dimension_semantics = [#tpu.dimension_semantics<parallel>], iteration_bounds = array<i64: 2>, scalar_prefetch = 0 : i64, scratch_operands = 1 : i64, tpu.core_type = #tpu.core_type<tc>, window_params = [{transform_indices = @transform_0, window_bounds = array<i64: 1, 4, 320>}, {pipeline_mode = #tpu.pipeline_mode<synchronous>, transform_indices = @transform_1, window_bounds = array<i64: 1, 320>}, {pipeline_mode = #tpu.pipeline_mode<synchronous>, transform_indices = @transform_2, window_bounds = array<i64: 8, 4>}, {pipeline_mode = #tpu.pipeline_mode<synchronous>, transform_indices = @transform_3, window_bounds = array<i64: 8, 1>}, {pipeline_mode = #tpu.pipeline_mode<synchronous>, transform_indices = @transform_4, window_bounds = array<i64: 9, 8, 8>}, {pipeline_mode = #tpu.pipeline_mode<synchronous>, transform_indices = @transform_5, window_bounds = array<i64: 8, 1>}, {transform_indices = @transform_6, window_bounds = array<i64: 1, 8, 320>}, {transform_indices = @transform_7, window_bounds = array<i64: 1, 8, 320>}, {transform_indices = @transform_8, window_bounds = array<i64: 1, 8, 2>}]} {
    %c0 = arith.constant 0 : index
    %c0_0 = arith.constant 0 : index
    %0 = vector.load %arg2[%c0, %c0_0] : memref<1x320xf32, #tpu.memory_space<vmem>>, vector<1x320xf32>
    %cst = arith.constant 0.000000e+00 : bf16
    %1 = vector.broadcast %cst : bf16 to vector<8x128xbf16>
    %c0_1 = arith.constant 0 : index
    %c0_2 = arith.constant 0 : index
    %2 = vector.load %arg10[%c0_1, %c0_2] : memref<8x512xbf16, #tpu.memory_space<vmem>>, vector<8x128xbf16>
    tpu.vector_store %arg10[%c0_1, %c0_2], %1 {strides = array<i32>} : memref<8x512xbf16, #tpu.memory_space<vmem>>, vector<8x128xbf16>,
    %cst_3 = arith.constant 0.000000e+00 : bf16
    %3 = vector.broadcast %cst_3 : bf16 to vector<8x64xbf16>
    %c0_4 = arith.constant 0 : index
    %c448 = arith.constant 448 : index
    %4 = vector.load %arg10[%c0_4, %c448] : memref<8x512xbf16, #tpu.memory_space<vmem>>, vector<8x64xbf16>
    tpu.vector_store %arg10[%c0_4, %c448], %3 {strides = array<i32>} : memref<8x512xbf16, #tpu.memory_space<vmem>>, vector<8x64xbf16>,
    %c0_5 = arith.constant 0 : index
    %c0_6 = arith.constant 0 : index
    %c0_7 = arith.constant 0 : index
    %5 = vector.load %arg1[%c0_5, %c0_6, %c0_7] : memref<1x4x320xf32, #tpu.memory_space<vmem>>, vector<1x4x320xf32>
    %6 = vector.shape_cast %5 : vector<1x4x320xf32> to vector<4x320xf32>
    %7 = arith.truncf %6 : vector<4x320xf32> to vector<4x320xbf16>
    %c0_8 = arith.constant 0 : index
    %c0_9 = arith.constant 0 : index
    %8 = vector.load %arg3[%c0_8, %c0_9] : memref<8x4xbf16, #tpu.memory_space<vmem>>, vector<8x4xbf16>
    %cst_10 = arith.constant dense<0.000000e+00> : vector<8x320xf32>
    %9 = tpu.matmul %8, %7, %cst_10 {dimension_numbers = #tpu.dot_dimension_numbers<[1], [0], [0], [1], [0, 0, 1, 1], [], []>} : vector<8x4xbf16>, vector<4x320xbf16>, vector<8x320xf32> -> vector<8x320xf32>
    %c0_11 = arith.constant 0 : index
    %c0_12 = arith.constant 0 : index
    %10 = vector.load %arg4[%c0_11, %c0_12] : memref<8x1xf32, #tpu.memory_space<vmem>>, vector<8x1xf32>
    %11 = vector.broadcast %10 : vector<8x1xf32> to vector<8x320xf32>
    %12 = arith.addf %9, %11 : vector<8x320xf32>
    %cst_13 = arith.constant 0.000000e+00 : f32
    %13 = vector.broadcast %cst_13 : f32 to vector<8x320xf32>
    %14 = arith.cmpf ogt, %12, %13 : vector<8x320xf32>
    %cst_14 = arith.constant 0.00999999977 : f32
    %15 = vector.broadcast %cst_14 : f32 to vector<8x320xf32>
    %16 = arith.mulf %15, %12 : vector<8x320xf32>
    %17 = arith.select %14, %12, %16 : vector<8x320xi1>, vector<8x320xf32>
    %18 = vector.broadcast %0 : vector<1x320xf32> to vector<8x320xf32>
    %19 = arith.mulf %17, %18 : vector<8x320xf32>
    %20 = arith.truncf %19 : vector<8x320xf32> to vector<8x320xbf16>
    %c0_15 = arith.constant 0 : index
    %c0_16 = arith.constant 0 : index
    %c0_17 = arith.constant 0 : index
    %21 = vector.load %arg7[%c0_15, %c0_16, %c0_17] : memref<1x8x320xbf16, #tpu.memory_space<vmem>>, vector<1x8x320xbf16>
    %22 = vector.shape_cast %21 : vector<1x8x320xbf16> to vector<8x320xbf16>
    %23 = vector.shape_cast %20 : vector<8x320xbf16> to vector<1x8x320xbf16>
    tpu.vector_store %arg7[%c0_15, %c0_16, %c0_17], %23 {strides = array<i32>} : memref<1x8x320xbf16, #tpu.memory_space<vmem>>, vector<1x8x320xbf16>,
    %24 = arith.truncf %19 : vector<8x320xf32> to vector<8x320xbf16>
    %c0_18 = arith.constant 0 : index
    %c128 = arith.constant 128 : index
    %25 = vector.load %arg10[%c0_18, %c128] : memref<8x512xbf16, #tpu.memory_space<vmem>>, vector<8x320xbf16>
    tpu.vector_store %arg10[%c0_18, %c128], %24 {strides = array<i32>} : memref<8x512xbf16, #tpu.memory_space<vmem>>, vector<8x320xbf16>,
    %c0_19 = arith.constant 0 : index
    %c0_20 = arith.constant 0 : index
    %c0_21 = arith.constant 0 : index
    %26 = vector.load %arg5[%c0_19, %c0_20, %c0_21] : memref<9x8x8xbf16, #tpu.memory_space<vmem>>, vector<1x8x8xbf16>
    %27 = vector.shape_cast %26 : vector<1x8x8xbf16> to vector<8x8xbf16>
    %c0_22 = arith.constant 0 : index
    %c107 = arith.constant 107 : index
    %28 = vector.load %arg10[%c0_22, %c107] : memref<8x512xbf16, #tpu.memory_space<vmem>>, vector<8x320xbf16>
    %cst_23 = arith.constant dense<0.000000e+00> : vector<8x320xf32>
    %29 = tpu.matmul %27, %28, %cst_23 {dimension_numbers = #tpu.dot_dimension_numbers<[1], [0], [0], [1], [0, 0, 1, 1], [], []>} : vector<8x8xbf16>, vector<8x320xbf16>, vector<8x320xf32> -> vector<8x320xf32>
    %c1 = arith.constant 1 : index
    %c0_24 = arith.constant 0 : index
    %c0_25 = arith.constant 0 : index
    %30 = vector.load %arg5[%c1, %c0_24, %c0_25] : memref<9x8x8xbf16, #tpu.memory_space<vmem>>, vector<1x8x8xbf16>
    %31 = vector.shape_cast %30 : vector<1x8x8xbf16> to vector<8x8xbf16>
    %c0_26 = arith.constant 0 : index
    %c108 = arith.constant 108 : index
    %32 = vector.load %arg10[%c0_26, %c108] : memref<8x512xbf16, #tpu.memory_space<vmem>>, vector<8x320xbf16>
    %cst_27 = arith.constant dense<0.000000e+00> : vector<8x320xf32>
    %33 = tpu.matmul %31, %32, %cst_27 {dimension_numbers = #tpu.dot_dimension_numbers<[1], [0], [0], [1], [0, 0, 1, 1], [], []>} : vector<8x8xbf16>, vector<8x320xbf16>, vector<8x320xf32> -> vector<8x320xf32>
    %34 = arith.addf %29, %33 : vector<8x320xf32>
    %c2 = arith.constant 2 : index
    %c0_28 = arith.constant 0 : index
    %c0_29 = arith.constant 0 : index
    %35 = vector.load %arg5[%c2, %c0_28, %c0_29] : memref<9x8x8xbf16, #tpu.memory_space<vmem>>, vector<1x8x8xbf16>
    %36 = vector.shape_cast %35 : vector<1x8x8xbf16> to vector<8x8xbf16>
    %c0_30 = arith.constant 0 : index
    %c109 = arith.constant 109 : index
    %37 = vector.load %arg10[%c0_30, %c109] : memref<8x512xbf16, #tpu.memory_space<vmem>>, vector<8x320xbf16>
    %cst_31 = arith.constant dense<0.000000e+00> : vector<8x320xf32>
    %38 = tpu.matmul %36, %37, %cst_31 {dimension_numbers = #tpu.dot_dimension_numbers<[1], [0], [0], [1], [0, 0, 1, 1], [], []>} : vector<8x8xbf16>, vector<8x320xbf16>, vector<8x320xf32> -> vector<8x320xf32>
    %39 = arith.addf %34, %38 : vector<8x320xf32>
    %c3 = arith.constant 3 : index
    %c0_32 = arith.constant 0 : index
    %c0_33 = arith.constant 0 : index
    %40 = vector.load %arg5[%c3, %c0_32, %c0_33] : memref<9x8x8xbf16, #tpu.memory_space<vmem>>, vector<1x8x8xbf16>
    %41 = vector.shape_cast %40 : vector<1x8x8xbf16> to vector<8x8xbf16>
    %c0_34 = arith.constant 0 : index
    %c127 = arith.constant 127 : index
    %42 = vector.load %arg10[%c0_34, %c127] : memref<8x512xbf16, #tpu.memory_space<vmem>>, vector<8x320xbf16>
    %cst_35 = arith.constant dense<0.000000e+00> : vector<8x320xf32>
    %43 = tpu.matmul %41, %42, %cst_35 {dimension_numbers = #tpu.dot_dimension_numbers<[1], [0], [0], [1], [0, 0, 1, 1], [], []>} : vector<8x8xbf16>, vector<8x320xbf16>, vector<8x320xf32> -> vector<8x320xf32>
    %44 = arith.addf %39, %43 : vector<8x320xf32>
    %c4 = arith.constant 4 : index
    %c0_36 = arith.constant 0 : index
    %c0_37 = arith.constant 0 : index
    %45 = vector.load %arg5[%c4, %c0_36, %c0_37] : memref<9x8x8xbf16, #tpu.memory_space<vmem>>, vector<1x8x8xbf16>
    %46 = vector.shape_cast %45 : vector<1x8x8xbf16> to vector<8x8xbf16>
    %c0_38 = arith.constant 0 : index
    %c128_39 = arith.constant 128 : index
    %47 = vector.load %arg10[%c0_38, %c128_39] : memref<8x512xbf16, #tpu.memory_space<vmem>>, vector<8x320xbf16>
    %cst_40 = arith.constant dense<0.000000e+00> : vector<8x320xf32>
    %48 = tpu.matmul %46, %47, %cst_40 {dimension_numbers = #tpu.dot_dimension_numbers<[1], [0], [0], [1], [0, 0, 1, 1], [], []>} : vector<8x8xbf16>, vector<8x320xbf16>, vector<8x320xf32> -> vector<8x320xf32>
    %49 = arith.addf %44, %48 : vector<8x320xf32>
    %c5 = arith.constant 5 : index
    %c0_41 = arith.constant 0 : index
    %c0_42 = arith.constant 0 : index
    %50 = vector.load %arg5[%c5, %c0_41, %c0_42] : memref<9x8x8xbf16, #tpu.memory_space<vmem>>, vector<1x8x8xbf16>
    %51 = vector.shape_cast %50 : vector<1x8x8xbf16> to vector<8x8xbf16>
    %c0_43 = arith.constant 0 : index
    %c129 = arith.constant 129 : index
    %52 = vector.load %arg10[%c0_43, %c129] : memref<8x512xbf16, #tpu.memory_space<vmem>>, vector<8x320xbf16>
    %cst_44 = arith.constant dense<0.000000e+00> : vector<8x320xf32>
    %53 = tpu.matmul %51, %52, %cst_44 {dimension_numbers = #tpu.dot_dimension_numbers<[1], [0], [0], [1], [0, 0, 1, 1], [], []>} : vector<8x8xbf16>, vector<8x320xbf16>, vector<8x320xf32> -> vector<8x320xf32>
    %54 = arith.addf %49, %53 : vector<8x320xf32>
    %c6 = arith.constant 6 : index
    %c0_45 = arith.constant 0 : index
    %c0_46 = arith.constant 0 : index
    %55 = vector.load %arg5[%c6, %c0_45, %c0_46] : memref<9x8x8xbf16, #tpu.memory_space<vmem>>, vector<1x8x8xbf16>
    %56 = vector.shape_cast %55 : vector<1x8x8xbf16> to vector<8x8xbf16>
    %c0_47 = arith.constant 0 : index
    %c147 = arith.constant 147 : index
    %57 = vector.load %arg10[%c0_47, %c147] : memref<8x512xbf16, #tpu.memory_space<vmem>>, vector<8x320xbf16>
    %cst_48 = arith.constant dense<0.000000e+00> : vector<8x320xf32>
    %58 = tpu.matmul %56, %57, %cst_48 {dimension_numbers = #tpu.dot_dimension_numbers<[1], [0], [0], [1], [0, 0, 1, 1], [], []>} : vector<8x8xbf16>, vector<8x320xbf16>, vector<8x320xf32> -> vector<8x320xf32>
    %59 = arith.addf %54, %58 : vector<8x320xf32>
    %c7 = arith.constant 7 : index
    %c0_49 = arith.constant 0 : index
    %c0_50 = arith.constant 0 : index
    %60 = vector.load %arg5[%c7, %c0_49, %c0_50] : memref<9x8x8xbf16, #tpu.memory_space<vmem>>, vector<1x8x8xbf16>
    %61 = vector.shape_cast %60 : vector<1x8x8xbf16> to vector<8x8xbf16>
    %c0_51 = arith.constant 0 : index
    %c148 = arith.constant 148 : index
    %62 = vector.load %arg10[%c0_51, %c148] : memref<8x512xbf16, #tpu.memory_space<vmem>>, vector<8x320xbf16>
    %cst_52 = arith.constant dense<0.000000e+00> : vector<8x320xf32>
    %63 = tpu.matmul %61, %62, %cst_52 {dimension_numbers = #tpu.dot_dimension_numbers<[1], [0], [0], [1], [0, 0, 1, 1], [], []>} : vector<8x8xbf16>, vector<8x320xbf16>, vector<8x320xf32> -> vector<8x320xf32>
    %64 = arith.addf %59, %63 : vector<8x320xf32>
    %c8 = arith.constant 8 : index
    %c0_53 = arith.constant 0 : index
    %c0_54 = arith.constant 0 : index
    %65 = vector.load %arg5[%c8, %c0_53, %c0_54] : memref<9x8x8xbf16, #tpu.memory_space<vmem>>, vector<1x8x8xbf16>
    %66 = vector.shape_cast %65 : vector<1x8x8xbf16> to vector<8x8xbf16>
    %c0_55 = arith.constant 0 : index
    %c149 = arith.constant 149 : index
    %67 = vector.load %arg10[%c0_55, %c149] : memref<8x512xbf16, #tpu.memory_space<vmem>>, vector<8x320xbf16>
    %cst_56 = arith.constant dense<0.000000e+00> : vector<8x320xf32>
    %68 = tpu.matmul %66, %67, %cst_56 {dimension_numbers = #tpu.dot_dimension_numbers<[1], [0], [0], [1], [0, 0, 1, 1], [], []>} : vector<8x8xbf16>, vector<8x320xbf16>, vector<8x320xf32> -> vector<8x320xf32>
    %69 = arith.addf %64, %68 : vector<8x320xf32>
    %c0_57 = arith.constant 0 : index
    %c0_58 = arith.constant 0 : index
    %70 = vector.load %arg6[%c0_57, %c0_58] : memref<8x1xf32, #tpu.memory_space<vmem>>, vector<8x1xf32>
    %71 = vector.broadcast %70 : vector<8x1xf32> to vector<8x320xf32>
    %72 = arith.addf %69, %71 : vector<8x320xf32>
    %cst_59 = arith.constant 0.000000e+00 : f32
    %73 = vector.broadcast %cst_59 : f32 to vector<8x320xf32>
    %74 = arith.cmpf ogt, %72, %73 : vector<8x320xf32>
    %cst_60 = arith.constant 0.00999999977 : f32
    %75 = vector.broadcast %cst_60 : f32 to vector<8x320xf32>
    %76 = arith.mulf %75, %72 : vector<8x320xf32>
    %77 = arith.select %74, %72, %76 : vector<8x320xi1>, vector<8x320xf32>
    %78 = vector.broadcast %0 : vector<1x320xf32> to vector<8x320xf32>
    %79 = arith.mulf %77, %78 : vector<8x320xf32>
    %80 = arith.truncf %79 : vector<8x320xf32> to vector<8x320xbf16>
    %c0_61 = arith.constant 0 : index
    %c0_62 = arith.constant 0 : index
    %c0_63 = arith.constant 0 : index
    %81 = vector.load %arg8[%c0_61, %c0_62, %c0_63] : memref<1x8x320xbf16, #tpu.memory_space<vmem>>, vector<1x8x320xbf16>
    %82 = vector.shape_cast %81 : vector<1x8x320xbf16> to vector<8x320xbf16>
    %83 = vector.shape_cast %80 : vector<8x320xbf16> to vector<1x8x320xbf16>
    tpu.vector_store %arg8[%c0_61, %c0_62, %c0_63], %83 {strides = array<i32>} : memref<1x8x320xbf16, #tpu.memory_space<vmem>>, vector<1x8x320xbf16>,
    %cst_64 = arith.constant dense<0.000000e+00> : vector<8xf32>
    %84 = vector.multi_reduction <add>, %79, %cst_64 [1] : vector<8x320xf32> to vector<8xf32>
    %85 = vector.shape_cast %84 : vector<8xf32> to vector<8x1xf32>
    %86 = arith.mulf %79, %79 : vector<8x320xf32>
    %cst_65 = arith.constant dense<0.000000e+00> : vector<8xf32>
    %87 = vector.multi_reduction <add>, %86, %cst_65 [1] : vector<8x320xf32> to vector<8xf32>
    %88 = vector.shape_cast %87 : vector<8xf32> to vector<8x1xf32>
    %89 = tpu.concatenate %85, %88 in 1 : vector<8x1xf32>, vector<8x1xf32> -> vector<8x2xf32>
    %c0_66 = arith.constant 0 : index
    %c0_67 = arith.constant 0 : index
    %c0_68 = arith.constant 0 : index
    %90 = vector.load %arg9[%c0_66, %c0_67, %c0_68] : memref<1x8x2xf32, #tpu.memory_space<vmem>>, vector<1x8x2xf32>
    %91 = vector.shape_cast %90 : vector<1x8x2xf32> to vector<8x2xf32>
    %92 = vector.shape_cast %89 : vector<8x2xf32> to vector<1x8x2xf32>
    tpu.vector_store %arg9[%c0_66, %c0_67, %c0_68], %92 {strides = array<i32>} : memref<1x8x2xf32, #tpu.memory_space<vmem>>, vector<1x8x2xf32>,
    return
  }
  func.func @transform_0(%arg0: i32) -> (i32, i32, i32) {
    %c0_i32 = arith.constant 0 : i32
    %c0_i32_0 = arith.constant 0 : i32
    %c0_i32_1 = arith.constant 0 : i32
    return %arg0, %c0_i32, %c0_i32_0 : i32, i32, i32
  }
  func.func @transform_1(%arg0: i32) -> (i32, i32) {
    %c0_i32 = arith.constant 0 : i32
    %c0_i32_0 = arith.constant 0 : i32
    %c0_i32_1 = arith.constant 0 : i32
    return %c0_i32, %c0_i32_0 : i32, i32
  }
  func.func @transform_2(%arg0: i32) -> (i32, i32) {
    %c0_i32 = arith.constant 0 : i32
    %c0_i32_0 = arith.constant 0 : i32
    %c0_i32_1 = arith.constant 0 : i32
    return %c0_i32, %c0_i32_0 : i32, i32
  }
  func.func @transform_3(%arg0: i32) -> (i32, i32) {
    %c0_i32 = arith.constant 0 : i32
    %c0_i32_0 = arith.constant 0 : i32
    %c0_i32_1 = arith.constant 0 : i32
    return %c0_i32, %c0_i32_0 : i32, i32
  }
  func.func @transform_4(%arg0: i32) -> (i32, i32, i32) {
    %c0_i32 = arith.constant 0 : i32
    %c0_i32_0 = arith.constant 0 : i32
    %c0_i32_1 = arith.constant 0 : i32
    %c0_i32_2 = arith.constant 0 : i32
    return %c0_i32, %c0_i32_0, %c0_i32_1 : i32, i32, i32
  }
  func.func @transform_5(%arg0: i32) -> (i32, i32) {
    %c0_i32 = arith.constant 0 : i32
    %c0_i32_0 = arith.constant 0 : i32
    %c0_i32_1 = arith.constant 0 : i32
    return %c0_i32, %c0_i32_0 : i32, i32
  }
  func.func @transform_6(%arg0: i32) -> (i32, i32, i32) {
    %c0_i32 = arith.constant 0 : i32
    %c0_i32_0 = arith.constant 0 : i32
    %c0_i32_1 = arith.constant 0 : i32
    return %arg0, %c0_i32, %c0_i32_0 : i32, i32, i32
  }
  func.func @transform_7(%arg0: i32) -> (i32, i32, i32) {
    %c0_i32 = arith.constant 0 : i32
    %c0_i32_0 = arith.constant 0 : i32
    %c0_i32_1 = arith.constant 0 : i32
    return %arg0, %c0_i32, %c0_i32_0 : i32, i32, i32
  }
  func.func @transform_8(%arg0: i32) -> (i32, i32, i32) {
    %c0_i32 = arith.constant 0 : i32
    %c0_i32_0 = arith.constant 0 : i32
    %c0_i32_1 = arith.constant 0 : i32
    return %arg0, %c0_i32, %c0_i32_0 : i32, i32, i32
  }
}

</mosaic_0001>

<llo_original>
// kernel: tpu_custom_call.1
$region0: #{tpu_custom_call.1}
  #allocation0 [shape = 'u32[]', space=smem, size = 0x4, offset = 0x4, fixed_abs, tag = 'smem constant byte address 0x4 - core index']
  #allocation1 [shape = 'u32[144,128]{1,0:T(1,128)}', space=vmem, size = 0x12000, scoped, tag = 'internal scratch']
  #allocation2 [shape = 'bf16[8,512]{1,0:T(8,128)(2,1)}', space=vmem, size = 0x2000, scoped, tag = 'scratch operand']
  %s0 = inlined_call_operand.vmem [shape: f32[2,4,320], index: 0, kind: input, shape index: {}]
  %s1 = inlined_call_operand.vmem [shape: f32[1,320], index: 1, kind: input, shape index: {}]
  %s2 = inlined_call_operand.vmem [shape: bf16[8,4], index: 2, kind: input, shape index: {}]
  %s3 = inlined_call_operand.vmem [shape: f32[8,1], index: 3, kind: input, shape index: {}]
  %s4 = inlined_call_operand.vmem [shape: bf16[9,8,8], index: 4, kind: input, shape index: {}]
  %s5 = inlined_call_operand.vmem [shape: f32[8,1], index: 5, kind: input, shape index: {}]
  %s6 = inlined_call_operand.hbm [shape: bf16[2,8,320], index: 6, kind: output, shape index: {0}]
  %s7 = inlined_call_operand.hbm [shape: bf16[2,8,320], index: 7, kind: output, shape index: {1}]
  %s8 = inlined_call_operand.vmem [shape: f32[2,8,2], index: 8, kind: output, shape index: {2}]
  %9 = xla_tuple %s6, %s7, %s8
  %s10 = sld [smem:[#allocation0]]
  $region73: #{tpu_custom_call.1} parent=0
    _
  %s12 = ssub.s32 1, %s10
  %s13 = scalar_select 0, %s12, %s10
  $region1: #{tpu_custom_call.1} parent=0
    #allocation3 [shape = 'u8[12288]{0}', space=vmem, size = 0x3000, scoped, tag = 'output window, operand 0']
    #allocation4 [shape = 's32[2]{0}', space=sflag, size = 0x8, scoped, tag = 'scoped memory for tpu_custom_call.1']
    #allocation5 [shape = 'u8[12288]{0}', space=vmem, size = 0x3000, scoped, tag = 'output window, operand 1']
    #allocation6 [shape = 's32[2]{0}', space=sflag, size = 0x8, scoped, tag = 'scoped memory for tpu_custom_call.1']
    %14 = vsyncpa [#allocation4], 0
    %s15 = scalar_lea.sflag [#allocation4], 1
    %16 = vsyncpa %s15, 0
    %17 = vsyncpa [#allocation6], 0
    %s18 = scalar_lea.sflag [#allocation6], 1
    %19 = vsyncpa %s18, 0
    loop: start=0, step=1, limit=4
    $region2: #{tpu_custom_call.1} parent=1 // loop_pre_header
      _
    $region3: #{tpu_custom_call.1} parent=1 // loop_header
      %s21 = sphi 0, %s25
      %p22 = scmp.ge.s32.totalorder %s21, 4
      %s31 = sphi 0, %s33
      %s34 = sphi 0, %s31
      %s35 = sphi 0, %s34
      %s51 = sphi 0, %s35
      %s55 = sphi 0, %s55
      %s57 = sphi 0, %s55
      %s58 = sphi 0, %s57
      %s72 = sphi 0, %s58
      %s76 = sphi 0, %s76
      %s78 = sphi 0, %s76
      %s79 = sphi 0, %s78
      %s93 = sphi 0, %s79
      %s97 = sphi 0, %s97
      %s99 = sphi 0, %s97
      %s100 = sphi 0, %s99
      %s114 = sphi 0, %s100
      %s118 = sphi 0, %s118
      %s120 = sphi 0, %s118
      %s121 = sphi 0, %s120
      %s135 = sphi 0, %s121
      %s139 = sphi 0, %s139
      %s141 = sphi 0, %s139
      %s142 = sphi 0, %s141
      %s156 = sphi 0, %s142
      %s162 = sphi 0, %s164
      %s165 = sphi 0, %s162
      %s166 = sphi 0, %s165
      %s182 = sphi 0, %s166
      %s188 = sphi 0, %s190
      %s191 = sphi 0, %s188
      %s192 = sphi 0, %s191
      %s208 = sphi 0, %s192
      %s214 = sphi 0, %s216
      %s217 = sphi 0, %s214
      %s218 = sphi 0, %s217
      %s234 = sphi 0, %s218
    $region4: #{tpu_custom_call.1} parent=1 // loop_header_branch
      %24 = sbr.rel (%p22) target = $region8
    $region5: #{tpu_custom_call.1} parent=1 // loop_body
      %s26 = ssub.s32 %s21, 1
      %s27 = ssub.s32 %s21, 2
      %s28 = sadd.s32 %s21, 1
      %s29 = ssub.s32 %s21, %s28
      %p30 = scmp.eq.s32.totalorder %s29, 0
      %s32 = sadd.s32 %s31, 1
      %s33 = scalar_select %p30, %s31, %s32
      %p36 = pneg %p30
      %p37 = scmp.eq.s32.totalorder %s21, 1
      %p38 = por %p36, %p37
      %p39 = scmp.ne.s32.totalorder %s31, %s34
      %p40 = scmp.eq.s32.totalorder %s21, 0
      %p41 = por %p39, %p40
      %p42 = scmp.ne.s32.totalorder %s31, %s34
      %p43 = scmp.eq.s32.totalorder %s26, 1
      %p44 = por %p42, %p43
      %p45 = scmp.ne.s32.totalorder %s34, %s35
      %p46 = scmp.eq.s32.totalorder %s26, 0
      %p47 = por %p45, %p46
      %p48 = scmp.ne.s32.totalorder %s34, %s35
      %p49 = scmp.eq.s32.totalorder %s27, 1
      %p50 = por %p48, %p49
      %p52 = scmp.ne.s32.totalorder %s35, %s51
      %p53 = scmp.eq.s32.totalorder %s27, 0
      %p54 = por %p52, %p53
      %s56 = sadd.s32 %s55, 1
      %p59 = scmp.eq.s32.totalorder %s21, 1
      %p60 = scmp.ne.s32.totalorder %s55, %s57
      %p61 = scmp.eq.s32.totalorder %s21, 0
      %p62 = por %p60, %p61
      %p63 = scmp.ne.s32.totalorder %s55, %s57
      %p64 = scmp.eq.s32.totalorder %s26, 1
      %p65 = por %p63, %p64
      %p66 = scmp.ne.s32.totalorder %s57, %s58
      %p67 = scmp.eq.s32.totalorder %s26, 0
      %p68 = por %p66, %p67
      %p69 = scmp.ne.s32.totalorder %s57, %s58
      %p70 = scmp.eq.s32.totalorder %s27, 1
      %p71 = por %p69, %p70
      %p73 = scmp.ne.s32.totalorder %s58, %s72
      %p74 = scmp.eq.s32.totalorder %s27, 0
      %p75 = por %p73, %p74
      %s77 = sadd.s32 %s76, 1
      %p80 = scmp.eq.s32.totalorder %s21, 1
      %p81 = scmp.ne.s32.totalorder %s76, %s78
      %p82 = scmp.eq.s32.totalorder %s21, 0
      %p83 = por %p81, %p82
      %p84 = scmp.ne.s32.totalorder %s76, %s78
      %p85 = scmp.eq.s32.totalorder %s26, 1
      %p86 = por %p84, %p85
      %p87 = scmp.ne.s32.totalorder %s78, %s79
      %p88 = scmp.eq.s32.totalorder %s26, 0
      %p89 = por %p87, %p88
      %p90 = scmp.ne.s32.totalorder %s78, %s79
      %p91 = scmp.eq.s32.totalorder %s27, 1
      %p92 = por %p90, %p91
      %p94 = scmp.ne.s32.totalorder %s79, %s93
      %p95 = scmp.eq.s32.totalorder %s27, 0
      %p96 = por %p94, %p95
      %s98 = sadd.s32 %s97, 1
      %p101 = scmp.eq.s32.totalorder %s21, 1
      %p102 = scmp.ne.s32.totalorder %s97, %s99
      %p103 = scmp.eq.s32.totalorder %s21, 0
      %p104 = por %p102, %p103
      %p105 = scmp.ne.s32.totalorder %s97, %s99
      %p106 = scmp.eq.s32.totalorder %s26, 1
      %p107 = por %p105, %p106
      %p108 = scmp.ne.s32.totalorder %s99, %s100
      %p109 = scmp.eq.s32.totalorder %s26, 0
      %p110 = por %p108, %p109
      %p111 = scmp.ne.s32.totalorder %s99, %s100
      %p112 = scmp.eq.s32.totalorder %s27, 1
      %p113 = por %p111, %p112
      %p115 = scmp.ne.s32.totalorder %s100, %s114
      %p116 = scmp.eq.s32.totalorder %s27, 0
      %p117 = por %p115, %p116
      %s119 = sadd.s32 %s118, 1
      %p122 = scmp.eq.s32.totalorder %s21, 1
      %p123 = scmp.ne.s32.totalorder %s118, %s120
      %p124 = scmp.eq.s32.totalorder %s21, 0
      %p125 = por %p123, %p124
      %p126 = scmp.ne.s32.totalorder %s118, %s120
      %p127 = scmp.eq.s32.totalorder %s26, 1
      %p128 = por %p126, %p127
      %p129 = scmp.ne.s32.totalorder %s120, %s121
      %p130 = scmp.eq.s32.totalorder %s26, 0
      %p131 = por %p129, %p130
      %p132 = scmp.ne.s32.totalorder %s120, %s121
      %p133 = scmp.eq.s32.totalorder %s27, 1
      %p134 = por %p132, %p133
      %p136 = scmp.ne.s32.totalorder %s121, %s135
      %p137 = scmp.eq.s32.totalorder %s27, 0
      %p138 = por %p136, %p137
      %s140 = sadd.s32 %s139, 1
      %p143 = scmp.eq.s32.totalorder %s21, 1
      %p144 = scmp.ne.s32.totalorder %s139, %s141
      %p145 = scmp.eq.s32.totalorder %s21, 0
      %p146 = por %p144, %p145
      %p147 = scmp.ne.s32.totalorder %s139, %s141
      %p148 = scmp.eq.s32.totalorder %s26, 1
      %p149 = por %p147, %p148
      %p150 = scmp.ne.s32.totalorder %s141, %s142
      %p151 = scmp.eq.s32.totalorder %s26, 0
      %p152 = por %p150, %p151
      %p153 = scmp.ne.s32.totalorder %s141, %s142
      %p154 = scmp.eq.s32.totalorder %s27, 1
      %p155 = por %p153, %p154
      %p157 = scmp.ne.s32.totalorder %s142, %s156
      %p158 = scmp.eq.s32.totalorder %s27, 0
      %p159 = por %p157, %p158
      %s160 = ssub.s32 %s21, %s28
      %p161 = scmp.eq.s32.totalorder %s160, 0
      %s163 = sadd.s32 %s162, 1
      %s164 = scalar_select %p161, %s162, %s163
      %p167 = pneg %p161
      %p168 = scmp.eq.s32.totalorder %s21, 1
      %p169 = por %p167, %p168
      %p170 = scmp.ne.s32.totalorder %s162, %s165
      %p171 = scmp.eq.s32.totalorder %s21, 0
      %p172 = por %p170, %p171
      %p173 = scmp.ne.s32.totalorder %s162, %s165
      %p174 = scmp.eq.s32.totalorder %s26, 1
      %p175 = por %p173, %p174
      %p176 = scmp.ne.s32.totalorder %s165, %s166
      %p177 = scmp.eq.s32.totalorder %s26, 0
      %p178 = por %p176, %p177
      %p179 = scmp.ne.s32.totalorder %s165, %s166
      %p180 = scmp.eq.s32.totalorder %s27, 1
      %p181 = por %p179, %p180
      %p183 = scmp.ne.s32.totalorder %s166, %s182
      %p184 = scmp.eq.s32.totalorder %s27, 0
      %p185 = por %p183, %p184
      %s186 = ssub.s32 %s21, %s28
      %p187 = scmp.eq.s32.totalorder %s186, 0
      %s189 = sadd.s32 %s188, 1
      %s190 = scalar_select %p187, %s188, %s189
      %p193 = pneg %p187
      %p194 = scmp.eq.s32.totalorder %s21, 1
      %p195 = por %p193, %p194
      %p196 = scmp.ne.s32.totalorder %s188, %s191
      %p197 = scmp.eq.s32.totalorder %s21, 0
      %p198 = por %p196, %p197
      %p199 = scmp.ne.s32.totalorder %s188, %s191
      %p200 = scmp.eq.s32.totalorder %s26, 1
      %p201 = por %p199, %p200
      %p202 = scmp.ne.s32.totalorder %s191, %s192
      %p203 = scmp.eq.s32.totalorder %s26, 0
      %p204 = por %p202, %p203
      %p205 = scmp.ne.s32.totalorder %s191, %s192
      %p206 = scmp.eq.s32.totalorder %s27, 1
      %p207 = por %p205, %p206
      %p209 = scmp.ne.s32.totalorder %s192, %s208
      %p210 = scmp.eq.s32.totalorder %s27, 0
      %p211 = por %p209, %p210
      %s212 = ssub.s32 %s21, %s28
      %p213 = scmp.eq.s32.totalorder %s212, 0
      %s215 = sadd.s32 %s214, 1
      %s216 = scalar_select %p213, %s214, %s215
      %p219 = pneg %p213
      %p220 = scmp.eq.s32.totalorder %s21, 1
      %p221 = por %p219, %p220
      %p222 = scmp.ne.s32.totalorder %s214, %s217
      %p223 = scmp.eq.s32.totalorder %s21, 0
      %p224 = por %p222, %p223
      %p225 = scmp.ne.s32.totalorder %s214, %s217
      %p226 = scmp.eq.s32.totalorder %s26, 1
      %p227 = por %p225, %p226
      %p228 = scmp.ne.s32.totalorder %s217, %s218
      %p229 = scmp.eq.s32.totalorder %s26, 0
      %p230 = por %p228, %p229
      %p231 = scmp.ne.s32.totalorder %s217, %s218
      %p232 = scmp.eq.s32.totalorder %s27, 1
      %p233 = por %p231, %p232
      %p235 = scmp.ne.s32.totalorder %s218, %s234
      %p236 = scmp.eq.s32.totalorder %s27, 0
      %p237 = por %p235, %p236
      %p238 = scmp.le.s32.totalorder 1, %s21
      %p239 = scmp.lt.s32.totalorder %s21, 3
      %p240 = pnand %p238, %p239
      %p241 = pneg %p240
      // Predicated region
      $region9: #{tpu_custom_call.1} parent=5 // pred_check
        _
      $region10: #{tpu_custom_call.1} parent=5 // pred_check_branch
        %243 = sbr.rel (%p240) target = $region12
      $region11: #{tpu_custom_call.1} parent=5 // pred_region
        %s244 = ssub.s32 %s21, 1
        // Predicated region
        $region13: #{tpu_custom_call.1} parent=11 // pred_check
          %p245 = pneg %p68
        $region14: #{tpu_custom_call.1} parent=11 // pred_check_branch
          %247 = sbr.rel (%p245) target = $region16
        $region15: #{tpu_custom_call.1} parent=11 // pred_region
          _
        $region16: #{tpu_custom_call.1} parent=11 // pred_fallthru
          _
        // Predicated region
        $region17: #{tpu_custom_call.1} parent=11 // pred_check
          %p248 = pneg %p89
        $region18: #{tpu_custom_call.1} parent=11 // pred_check_branch
          %250 = sbr.rel (%p248) target = $region20
        $region19: #{tpu_custom_call.1} parent=11 // pred_region
          _
        $region20: #{tpu_custom_call.1} parent=11 // pred_fallthru
          _
        // Predicated region
        $region21: #{tpu_custom_call.1} parent=11 // pred_check
          %p251 = pneg %p110
        $region22: #{tpu_custom_call.1} parent=11 // pred_check_branch
          %253 = sbr.rel (%p251) target = $region24
        $region23: #{tpu_custom_call.1} parent=11 // pred_region
          _
        $region24: #{tpu_custom_call.1} parent=11 // pred_fallthru
          _
        // Predicated region
        $region25: #{tpu_custom_call.1} parent=11 // pred_check
          %p254 = pneg %p131
        $region26: #{tpu_custom_call.1} parent=11 // pred_check_branch
          %256 = sbr.rel (%p254) target = $region28
        $region27: #{tpu_custom_call.1} parent=11 // pred_region
          _
        $region28: #{tpu_custom_call.1} parent=11 // pred_fallthru
          _
        // Predicated region
        $region29: #{tpu_custom_call.1} parent=11 // pred_check
          %p257 = pneg %p152
        $region30: #{tpu_custom_call.1} parent=11 // pred_check_branch
          %259 = sbr.rel (%p257) target = $region32
        $region31: #{tpu_custom_call.1} parent=11 // pred_region
          _
        $region32: #{tpu_custom_call.1} parent=11 // pred_fallthru
          _
      $region12: #{tpu_custom_call.1} parent=5 // pred_fallthru
        _
      %p260 = scmp.lt.s32.totalorder %s21, 2
      // Predicated region
      $region33: #{tpu_custom_call.1} parent=5 // pred_check
        %p261 = pneg %p260
      $region34: #{tpu_custom_call.1} parent=5 // pred_check_branch
        %263 = sbr.rel (%p261) target = $region36
      $region35: #{tpu_custom_call.1} parent=5 // pred_region
        // Predicated region
        $region37: #{tpu_custom_call.1} parent=35 // pred_check
          %p264 = pneg %p41
        $region38: #{tpu_custom_call.1} parent=35 // pred_check_branch
          %266 = sbr.rel (%p264) target = $region40
        $region39: #{tpu_custom_call.1} parent=35 // pred_region
          %p267 = scmp.lt.s32.totalorder %s21, 1
          %s268 = scalar_select %p267, %s21, 1
          %s269 = smul.addr %s268, 3
          %s270 = smul.addr %s269, 4
          %s271 = scalar_lea.vmem %s0, %s270
        $region40: #{tpu_custom_call.1} parent=35 // pred_fallthru
          _
      $region36: #{tpu_custom_call.1} parent=5 // pred_fallthru
        _
      %p272 = scmp.le.s32.totalorder 1, %s21
      %p273 = scmp.lt.s32.totalorder %s21, 3
      %p274 = pnand %p272, %p273
      %p275 = pneg %p274
      // Predicated region
      $region41: #{tpu_custom_call.1} parent=5 // pred_check
        _
      $region42: #{tpu_custom_call.1} parent=5 // pred_check_branch
        %277 = sbr.rel (%p274) target = $region44
      $region43: #{tpu_custom_call.1} parent=5 // pred_region
        %s278 = ssub.s32 %s21, 1
        %p279 = scmp.lt.s32.totalorder %s26, 1
        %s280 = scalar_select %p279, %s26, 1
        %s281 = smul.addr %s280, 3
        %s282 = smul.addr %s281, 4
        %s283 = scalar_lea.vmem %s0, %s282
        %p284 = pneg %p47
        %p285 = pneg %p44
        %p286 = pneg %p68
        %p287 = pneg %p65
        %p288 = pneg %p89
        %p289 = pneg %p86
        %p290 = pneg %p110
        %p291 = pneg %p107
        %p292 = pneg %p131
        %p293 = pneg %p128
        %p294 = pneg %p152
        %p295 = pneg %p149
        %p296 = pneg %p178
        %p297 = pneg %p175
        %s298 = sand.u32 %s165, 1
        %s299 = scalar_lea.sflag [#allocation4], %s298
        %s300 = sand.u32 %s165, 1
        %s301 = smul.addr %s300, 12
        %s302 = scalar_lea.vmem [#allocation3], %s301
        %p303 = pneg %p204
        %p304 = pneg %p201
        %s305 = sand.u32 %s191, 1
        %s306 = scalar_lea.sflag [#allocation6], %s305
        %s307 = sand.u32 %s191, 1
        %s308 = smul.addr %s307, 12
        %s309 = scalar_lea.vmem [#allocation5], %s308
        %p310 = pneg %p230
        %p311 = pneg %p227
        %p312 = scmp.lt.s32.totalorder %s26, 1
        %s313 = scalar_select %p312, %s26, 1
        %s314 = smul.addr %s313, 8
        %s315 = scalar_lea.vmem %s8, %s314
        %p316 = scmp.lt.s32.totalorder %s26, 1
        %s317 = scalar_select %p316, %s26, 1
        %s318 = smul.addr %s317, 3
        %s319 = smul.addr %s318, 4
        %s320 = scalar_lea.vmem %s0, %s319
        %p321 = scmp.lt.s32.totalorder %s26, 1
        %s322 = scalar_select %p321, %s26, 1
        %s323 = smul.addr %s322, 8
        %s324 = scalar_lea.vmem %s8, %s323
        %v326 = vld [vmem:[%s1] sm:$0x7]
        %327 = vst [vmem:[#allocation2] sm:$0xf] 0
        %vm328 = vcmask 1043968
        %329 = vst.msk [vmem:[#allocation2 + $0xc] sm:$0xf] %vm328, 0
        %v330 = vld [vmem:[%s320] sm:$0xff]
        %v331 = vld [vmem:[%s320 + $0x8] sm:$0xf]
        %v333 = vcombine.high %v330, %v330
        %v335 = vpack.c.bf16 %v330, %v330
        %v336 = vpack.c.bf16 %v333, %v333
        %v337 = vpack.c.bf16 %v331, %v331
        %v338 = vld [vmem:[%s2] sm:$0xf]
        %v339 = vld [vmem:[%s3] sm:$0xff]
        %341 = vset.pattern.permute.xlu0 0
        %342 = vperm.xlu0 %341, %v339
        %v343 = vpop.permute.xlu0 %342
        %vm345 = vcmask 31744
        %v347 = vsel %vm345, %v338, 0
        %vm349 = vcmask 1041408
        %v351 = vsel %vm349, %v335, 0
        %v354 = vsel %vm349, %v336, 0
        %v357 = vsel %vm349, %v337, 0
        %359 = vmatprep.subr.bf16.mxu0 0
        %360 = vmatpush1.bf16.msra.mxu0 0
        %361 = vmatprep.subr.bf16.mxu0 0
        %362 = vmatpush1.bf16.msra.mxu0 0
        %363 = vmatprep.subr.bf16.mxu0 0
        %364 = vmatpush1.bf16.msra.mxu0 0
        %365 = vmatprep.subr.bf16.mxu0 0
        %366 = vmatpush1.bf16.msra.mxu0 0
        %367 = vmatprep.subr.bf16.mxu0 0
        %368 = vmatpush1.bf16.msra.mxu0 0
        %369 = vmatprep.subr.bf16.mxu0 0
        %370 = vmatpush1.bf16.msra.mxu0 0
        %371 = vmatprep.subr.bf16.mxu0 0
        %372 = vmatpush1.bf16.msra.mxu0 0
        %373 = vmatprep.subr.bf16.mxu0 %v354
        %374 = vmatpush1.bf16.msra.mxu0 %v351
        %375 = vmatprep.subr.bf16.mxu0 0
        %376 = vmatpush2.bf16.msra.mxu0 0
        %377 = vmatprep.subr.bf16.mxu0 0
        %378 = vmatpush2.bf16.msra.mxu0 0
        %379 = vmatprep.subr.bf16.mxu0 0
        %380 = vmatpush2.bf16.msra.mxu0 0
        %381 = vmatprep.subr.bf16.mxu0 0
        %382 = vmatpush2.bf16.msra.mxu0 0
        %383 = vmatprep.subr.bf16.mxu0 0
        %384 = vmatpush2.bf16.msra.mxu0 0
        %385 = vmatprep.subr.bf16.mxu0 0
        %386 = vmatpush2.bf16.msra.mxu0 0
        %387 = vmatprep.subr.bf16.mxu0 0
        %388 = vmatpush2.bf16.msra.mxu0 0
        %389 = vmatprep.subr.bf16.mxu0 0
        %390 = vmatpush2.bf16.msra.mxu0 0
        %391 = vmatprep.mubr.bf16.mxu0 0
        %392 = vmatmul.mubr.bf16.gmra.mxu0 %v347
        %v393 = vpop.f32.mrf.mxu0
        %v394 = vadd.f32 %v343, %v393
        %v395 = vpop.f32.mrf.mxu0
        %v396 = vadd.f32 %v343, %v395
        %v397 = vpop.f32.mrf.mxu0
        %v398 = vpop.f32.mrf.mxu0
        %399 = vdwg.mxu0
        %400 = vmatprep.subr.bf16.mxu0 0
        %401 = vmatpush1.bf16.msra.mxu0 0
        %402 = vmatprep.subr.bf16.mxu0 0
        %403 = vmatpush1.bf16.msra.mxu0 0
        %404 = vmatprep.subr.bf16.mxu0 0
        %405 = vmatpush1.bf16.msra.mxu0 0
        %406 = vmatprep.subr.bf16.mxu0 0
        %407 = vmatpush1.bf16.msra.mxu0 0
        %408 = vmatprep.subr.bf16.mxu0 0
        %409 = vmatpush1.bf16.msra.mxu0 0
        %410 = vmatprep.subr.bf16.mxu0 0
        %411 = vmatpush1.bf16.msra.mxu0 0
        %412 = vmatprep.subr.bf16.mxu0 0
        %413 = vmatpush1.bf16.msra.mxu0 0
        %414 = vmatprep.subr.bf16.mxu0 0
        %415 = vmatpush1.bf16.msra.mxu0 %v357
        %416 = vmatprep.subr.bf16.mxu0 0
        %417 = vmatpush2.bf16.msra.mxu0 0
        %418 = vmatprep.subr.bf16.mxu0 0
        %419 = vmatpush2.bf16.msra.mxu0 0
        %420 = vmatprep.subr.bf16.mxu0 0
        %421 = vmatpush2.bf16.msra.mxu0 0
        %422 = vmatprep.subr.bf16.mxu0 0
        %423 = vmatpush2.bf16.msra.mxu0 0
        %424 = vmatprep.subr.bf16.mxu0 0
        %425 = vmatpush2.bf16.msra.mxu0 0
        %426 = vmatprep.subr.bf16.mxu0 0
        %427 = vmatpush2.bf16.msra.mxu0 0
        %428 = vmatprep.subr.bf16.mxu0 0
        %429 = vmatpush2.bf16.msra.mxu0 0
        %430 = vmatprep.subr.bf16.mxu0 0
        %431 = vmatpush2.bf16.msra.mxu0 0
        %432 = vmatprep.mubr.bf16.mxu0 0
        %433 = vmatmul.mubr.bf16.gmra.mxu0 %v347
        %v434 = vpop.f32.mrf.mxu0
        %v435 = vadd.f32 %v343, %v434
        %v436 = vpop.f32.mrf.mxu0
        %v437 = vpop.f32.mrf.mxu0
        %v438 = vpop.f32.mrf.mxu0
        %439 = vdwg.mxu0
        %vm440 = vcmp.gt.f32.partialorder %v394, 0.0
        %vm441 = vcmp.gt.f32.partialorder %v396, 0.0
        %vm442 = vcmp.gt.f32.partialorder %v435, 0.0
        %v443 = vmul.f32 %v394, 0.01
        %v444 = vmul.f32 %v396, 0.01
        %v445 = vmul.f32 %v435, 0.01
        %v446 = vsel %vm440, %v394, %v443
        %v447 = vsel %vm441, %v396, %v444
        %v448 = vsel %vm442, %v435, %v445
        %v450 = vlaneseq
        %v451 = vshrl.u32 %v450, 7
        %v452 = vsub.s32 0, %v451
        %v453 = vrot.slane %v326, %v452
        %v454 = vlaneseq
        %v455 = vshrl.u32 %v454, 7
        %v456 = vsub.s32 1, %v455
        %v457 = vrot.slane %v326, %v456
        %v458 = vlaneseq
        %v459 = vshrl.u32 %v458, 7
        %v460 = vsub.s32 2, %v459
        %v461 = vrot.slane %v326, %v460
        %v465 = vmul.f32 %v446, %v453
        %v466 = vmul.f32 %v447, %v457
        %v467 = vmul.f32 %v448, %v461
        %v468 = vpack.c.bf16 %v465, %v465
        %v469 = vpack.c.bf16 %v466, %v466
        %v470 = vpack.c.bf16 %v467, %v467
        %v474 = vunpack.c.l.b16 %v468
        %v475 = vunpack.c.l.b16 %v469
        %v476 = vunpack.c.l.b16 %v470
        %v477 = vpack.c.b16 %v475, %v474
        %v478 = vpack.c.b16 %v476, %v476
        %481 = vst [vmem:[%s302] sm:$0xff] %v477
        %vm482 = vcmask 519168
        %483 = vst.msk [vmem:[%s302 + $0x8] sm:$0xf] %vm482, %v478
        %484 = vst [vmem:[#allocation2 + $0x4] sm:$0xff] %v477
        %485 = vst.msk [vmem:[#allocation2 + $0xc] sm:$0xf] %vm482, %v478
        %v486 = vld [vmem:[%s4] sm:$0xf]
        %v487 = vld [vmem:[#allocation2] sm:$0xff]
        %v488 = vld [vmem:[#allocation2 + $0x8] sm:$0xff]
        %s489 = scalar_lea.vmem %s4, 4
        %v490 = vld [vmem:[%s489] sm:$0xf]
        %v493 = vunpack.c.l.b16 %v487
        %v494 = vunpack.c.h.b16 %v487
        %v495 = vunpack.c.l.b16 %v488
        %v496 = vunpack.c.h.b16 %v488
        %v497 = vpack.c.b16 %v493, %v493
        %v498 = vpack.c.b16 %v494, %v494
        %v499 = vpack.c.b16 %v495, %v495
        %v500 = vpack.c.b16 %v496, %v496
        %501 = vrot.lane.b32.xlu0 %v497, 20
        %v502 = vpop.permute.xlu0 %501
        %503 = vrot.lane.b32.xlu0 %v498, 20
        %v504 = vpop.permute.xlu0 %503
        %505 = vrot.lane.b32.xlu0 %v499, 20
        %v506 = vpop.permute.xlu0 %505
        %507 = vrot.lane.b32.xlu0 %v500, 20
        %v508 = vpop.permute.xlu0 %507
        %vm509 = vcmask 162816
        %v510 = vsel %vm509, %v502, %v504
        %v511 = vsel %vm509, %v504, %v506
        %v512 = vsel %vm509, %v506, %v508
        %vm513 = vcmask 64512
        %v515 = vsel %vm513, %v490, 0
        %vm517 = vcmask 1043456
        %v519 = vsel %vm517, %v510, 0
        %v522 = vsel %vm517, %v511, 0
        %v525 = vsel %vm517, %v512, 0
        %527 = vmatprep.subr.bf16.mxu0 0
        %528 = vmatpush1.bf16.msra.mxu0 0
        %529 = vmatprep.subr.bf16.mxu0 0
        %530 = vmatpush1.bf16.msra.mxu0 0
        %531 = vmatprep.subr.bf16.mxu0 0
        %532 = vmatpush1.bf16.msra.mxu0 0
        %533 = vmatprep.subr.bf16.mxu0 0
        %534 = vmatpush1.bf16.msra.mxu0 0
        %535 = vmatprep.subr.bf16.mxu0 0
        %536 = vmatpush1.bf16.msra.mxu0 0
        %537 = vmatprep.subr.bf16.mxu0 0
        %538 = vmatpush1.bf16.msra.mxu0 0
        %539 = vmatprep.subr.bf16.mxu0 0
        %540 = vmatpush1.bf16.msra.mxu0 0
        %541 = vmatprep.subr.bf16.mxu0 %v522
        %542 = vmatpush1.bf16.msra.mxu0 %v519
        %543 = vmatprep.subr.bf16.mxu0 0
        %544 = vmatpush2.bf16.msra.mxu0 0
        %545 = vmatprep.subr.bf16.mxu0 0
        %546 = vmatpush2.bf16.msra.mxu0 0
        %547 = vmatprep.subr.bf16.mxu0 0
        %548 = vmatpush2.bf16.msra.mxu0 0
        %549 = vmatprep.subr.bf16.mxu0 0
        %550 = vmatpush2.bf16.msra.mxu0 0
        %551 = vmatprep.subr.bf16.mxu0 0
        %552 = vmatpush2.bf16.msra.mxu0 0
        %553 = vmatprep.subr.bf16.mxu0 0
        %554 = vmatpush2.bf16.msra.mxu0 0
        %555 = vmatprep.subr.bf16.mxu0 0
        %556 = vmatpush2.bf16.msra.mxu0 0
        %557 = vmatprep.subr.bf16.mxu0 0
        %558 = vmatpush2.bf16.msra.mxu0 0
        %559 = vmatprep.mubr.bf16.mxu0 0
        %560 = vmatmul.mubr.bf16.gmra.mxu0 %v515
        %v561 = vpop.f32.mrf.mxu0
        %v562 = vadd.f32 0.0, %v561
        %v563 = vpop.f32.mrf.mxu0
        %v564 = vadd.f32 0.0, %v563
        %v565 = vpop.f32.mrf.mxu0
        %v566 = vpop.f32.mrf.mxu0
        %567 = vdwg.mxu0
        %568 = vmatprep.subr.bf16.mxu0 0
        %569 = vmatpush1.bf16.msra.mxu0 0
        %570 = vmatprep.subr.bf16.mxu0 0
        %571 = vmatpush1.bf16.msra.mxu0 0
        %572 = vmatprep.subr.bf16.mxu0 0
        %573 = vmatpush1.bf16.msra.mxu0 0
        %574 = vmatprep.subr.bf16.mxu0 0
        %575 = vmatpush1.bf16.msra.mxu0 0
        %576 = vmatprep.subr.bf16.mxu0 0
        %577 = vmatpush1.bf16.msra.mxu0 0
        %578 = vmatprep.subr.bf16.mxu0 0
        %579 = vmatpush1.bf16.msra.mxu0 0
        %580 = vmatprep.subr.bf16.mxu0 0
        %581 = vmatpush1.bf16.msra.mxu0 0
        %582 = vmatprep.subr.bf16.mxu0 0
        %583 = vmatpush1.bf16.msra.mxu0 %v525
        %584 = vmatprep.subr.bf16.mxu0 0
        %585 = vmatpush2.bf16.msra.mxu0 0
        %586 = vmatprep.subr.bf16.mxu0 0
        %587 = vmatpush2.bf16.msra.mxu0 0
        %588 = vmatprep.subr.bf16.mxu0 0
        %589 = vmatpush2.bf16.msra.mxu0 0
        %590 = vmatprep.subr.bf16.mxu0 0
        %591 = vmatpush2.bf16.msra.mxu0 0
        %592 = vmatprep.subr.bf16.mxu0 0
        %593 = vmatpush2.bf16.msra.mxu0 0
        %594 = vmatprep.subr.bf16.mxu0 0
        %595 = vmatpush2.bf16.msra.mxu0 0
        %596 = vmatprep.subr.bf16.mxu0 0
        %597 = vmatpush2.bf16.msra.mxu0 0
        %598 = vmatprep.subr.bf16.mxu0 0
        %599 = vmatpush2.bf16.msra.mxu0 0
        %600 = vmatprep.mubr.bf16.mxu0 0
        %601 = vmatmul.mubr.bf16.gmra.mxu0 %v515
        %v602 = vpop.f32.mrf.mxu0
        %v603 = vadd.f32 0.0, %v602
        %v604 = vpop.f32.mrf.mxu0
        %v605 = vpop.f32.mrf.mxu0
        %v606 = vpop.f32.mrf.mxu0
        %607 = vdwg.mxu0
        %608 = vrot.lane.b32.xlu0 %v497, 21
        %v609 = vpop.permute.xlu0 %608
        %610 = vrot.lane.b32.xlu0 %v498, 21
        %v611 = vpop.permute.xlu0 %610
        %612 = vrot.lane.b32.xlu0 %v499, 21
        %v613 = vpop.permute.xlu0 %612
        %614 = vrot.lane.b32.xlu0 %v500, 21
        %v615 = vpop.permute.xlu0 %614
        %vm616 = vcmask 171008
        %v617 = vsel %vm616, %v609, %v611
        %v618 = vsel %vm616, %v611, %v613
        %v619 = vsel %vm616, %v613, %v615
        %v621 = vsel %vm513, %v486, 0
        %v624 = vsel %vm517, %v617, 0
        %v627 = vsel %vm517, %v618, 0
        %v630 = vsel %vm517, %v619, 0
        %632 = vmatprep.subr.bf16.mxu0 0
        %633 = vmatpush1.bf16.msra.mxu0 0
        %634 = vmatprep.subr.bf16.mxu0 0
        %635 = vmatpush1.bf16.msra.mxu0 0
        %636 = vmatprep.subr.bf16.mxu0 0
        %637 = vmatpush1.bf16.msra.mxu0 0
        %638 = vmatprep.subr.bf16.mxu0 0
        %639 = vmatpush1.bf16.msra.mxu0 0
        %640 = vmatprep.subr.bf16.mxu0 0
        %641 = vmatpush1.bf16.msra.mxu0 0
        %642 = vmatprep.subr.bf16.mxu0 0
        %643 = vmatpush1.bf16.msra.mxu0 0
        %644 = vmatprep.subr.bf16.mxu0 0
        %645 = vmatpush1.bf16.msra.mxu0 0
        %646 = vmatprep.subr.bf16.mxu0 %v627
        %647 = vmatpush1.bf16.msra.mxu0 %v624
        %648 = vmatprep.subr.bf16.mxu0 0
        %649 = vmatpush2.bf16.msra.mxu0 0
        %650 = vmatprep.subr.bf16.mxu0 0
        %651 = vmatpush2.bf16.msra.mxu0 0
        %652 = vmatprep.subr.bf16.mxu0 0
        %653 = vmatpush2.bf16.msra.mxu0 0
        %654 = vmatprep.subr.bf16.mxu0 0
        %655 = vmatpush2.bf16.msra.mxu0 0
        %656 = vmatprep.subr.bf16.mxu0 0
        %657 = vmatpush2.bf16.msra.mxu0 0
        %658 = vmatprep.subr.bf16.mxu0 0
        %659 = vmatpush2.bf16.msra.mxu0 0
        %660 = vmatprep.subr.bf16.mxu0 0
        %661 = vmatpush2.bf16.msra.mxu0 0
        %662 = vmatprep.subr.bf16.mxu0 0
        %663 = vmatpush2.bf16.msra.mxu0 0
        %664 = vmatprep.mubr.bf16.mxu0 0
        %665 = vmatmul.mubr.bf16.gmra.mxu0 %v621
        %v666 = vpop.f32.mrf.mxu0
        %v667 = vadd.f32 %v562, %v666
        %v668 = vpop.f32.mrf.mxu0
        %v669 = vadd.f32 %v564, %v668
        %v670 = vpop.f32.mrf.mxu0
        %v671 = vpop.f32.mrf.mxu0
        %672 = vdwg.mxu0
        %673 = vmatprep.subr.bf16.mxu0 0
        %674 = vmatpush1.bf16.msra.mxu0 0
        %675 = vmatprep.subr.bf16.mxu0 0
        %676 = vmatpush1.bf16.msra.mxu0 0
        %677 = vmatprep.subr.bf16.mxu0 0
        %678 = vmatpush1.bf16.msra.mxu0 0
        %679 = vmatprep.subr.bf16.mxu0 0
        %680 = vmatpush1.bf16.msra.mxu0 0
        %681 = vmatprep.subr.bf16.mxu0 0
        %682 = vmatpush1.bf16.msra.mxu0 0
        %683 = vmatprep.subr.bf16.mxu0 0
        %684 = vmatpush1.bf16.msra.mxu0 0
        %685 = vmatprep.subr.bf16.mxu0 0
        %686 = vmatpush1.bf16.msra.mxu0 0
        %687 = vmatprep.subr.bf16.mxu0 0
        %688 = vmatpush1.bf16.msra.mxu0 %v630
        %689 = vmatprep.subr.bf16.mxu0 0
        %690 = vmatpush2.bf16.msra.mxu0 0
        %691 = vmatprep.subr.bf16.mxu0 0
        %692 = vmatpush2.bf16.msra.mxu0 0
        %693 = vmatprep.subr.bf16.mxu0 0
        %694 = vmatpush2.bf16.msra.mxu0 0
        %695 = vmatprep.subr.bf16.mxu0 0
        %696 = vmatpush2.bf16.msra.mxu0 0
        %697 = vmatprep.subr.bf16.mxu0 0
        %698 = vmatpush2.bf16.msra.mxu0 0
        %699 = vmatprep.subr.bf16.mxu0 0
        %700 = vmatpush2.bf16.msra.mxu0 0
        %701 = vmatprep.subr.bf16.mxu0 0
        %702 = vmatpush2.bf16.msra.mxu0 0
        %703 = vmatprep.subr.bf16.mxu0 0
        %704 = vmatpush2.bf16.msra.mxu0 0
        %705 = vmatprep.mubr.bf16.mxu0 0
        %706 = vmatmul.mubr.bf16.gmra.mxu0 %v621
        %v707 = vpop.f32.mrf.mxu0
        %v708 = vadd.f32 %v603, %v707
        %v709 = vpop.f32.mrf.mxu0
        %v710 = vpop.f32.mrf.mxu0
        %v711 = vpop.f32.mrf.mxu0
        %712 = vdwg.mxu0
        %s713 = scalar_lea.vmem %s4, 8
        %v714 = vld [vmem:[%s713] sm:$0xf]
        %715 = vrot.lane.b32.xlu0 %v497, 19
        %v716 = vpop.permute.xlu0 %715
        %717 = vrot.lane.b32.xlu0 %v498, 19
        %v718 = vpop.permute.xlu0 %717
        %719 = vrot.lane.b32.xlu0 %v499, 19
        %v720 = vpop.permute.xlu0 %719
        %721 = vrot.lane.b32.xlu0 %v500, 19
        %v722 = vpop.permute.xlu0 %721
        %vm723 = vcmask 154624
        %v724 = vsel %vm723, %v716, %v718
        %v725 = vsel %vm723, %v718, %v720
        %v726 = vsel %vm723, %v720, %v722
        %v728 = vsel %vm513, %v714, 0
        %v731 = vsel %vm517, %v724, 0
        %v734 = vsel %vm517, %v725, 0
        %v737 = vsel %vm517, %v726, 0
        %739 = vmatprep.subr.bf16.mxu0 0
        %740 = vmatpush1.bf16.msra.mxu0 0
        %741 = vmatprep.subr.bf16.mxu0 0
        %742 = vmatpush1.bf16.msra.mxu0 0
        %743 = vmatprep.subr.bf16.mxu0 0
        %744 = vmatpush1.bf16.msra.mxu0 0
        %745 = vmatprep.subr.bf16.mxu0 0
        %746 = vmatpush1.bf16.msra.mxu0 0
        %747 = vmatprep.subr.bf16.mxu0 0
        %748 = vmatpush1.bf16.msra.mxu0 0
        %749 = vmatprep.subr.bf16.mxu0 0
        %750 = vmatpush1.bf16.msra.mxu0 0
        %751 = vmatprep.subr.bf16.mxu0 0
        %752 = vmatpush1.bf16.msra.mxu0 0
        %753 = vmatprep.subr.bf16.mxu0 %v734
        %754 = vmatpush1.bf16.msra.mxu0 %v731
        %755 = vmatprep.subr.bf16.mxu0 0
        %756 = vmatpush2.bf16.msra.mxu0 0
        %757 = vmatprep.subr.bf16.mxu0 0
        %758 = vmatpush2.bf16.msra.mxu0 0
        %759 = vmatprep.subr.bf16.mxu0 0
        %760 = vmatpush2.bf16.msra.mxu0 0
        %761 = vmatprep.subr.bf16.mxu0 0
        %762 = vmatpush2.bf16.msra.mxu0 0
        %763 = vmatprep.subr.bf16.mxu0 0
        %764 = vmatpush2.bf16.msra.mxu0 0
        %765 = vmatprep.subr.bf16.mxu0 0
        %766 = vmatpush2.bf16.msra.mxu0 0
        %767 = vmatprep.subr.bf16.mxu0 0
        %768 = vmatpush2.bf16.msra.mxu0 0
        %769 = vmatprep.subr.bf16.mxu0 0
        %770 = vmatpush2.bf16.msra.mxu0 0
        %771 = vmatprep.mubr.bf16.mxu0 0
        %772 = vmatmul.mubr.bf16.gmra.mxu0 %v728
        %v773 = vpop.f32.mrf.mxu0
        %v774 = vadd.f32 0.0, %v773
        %v775 = vpop.f32.mrf.mxu0
        %v776 = vadd.f32 0.0, %v775
        %v777 = vpop.f32.mrf.mxu0
        %v778 = vpop.f32.mrf.mxu0
        %779 = vdwg.mxu0
        %780 = vmatprep.subr.bf16.mxu0 0
        %781 = vmatpush1.bf16.msra.mxu0 0
        %782 = vmatprep.subr.bf16.mxu0 0
        %783 = vmatpush1.bf16.msra.mxu0 0
        %784 = vmatprep.subr.bf16.mxu0 0
        %785 = vmatpush1.bf16.msra.mxu0 0
        %786 = vmatprep.subr.bf16.mxu0 0
        %787 = vmatpush1.bf16.msra.mxu0 0
        %788 = vmatprep.subr.bf16.mxu0 0
        %789 = vmatpush1.bf16.msra.mxu0 0
        %790 = vmatprep.subr.bf16.mxu0 0
        %791 = vmatpush1.bf16.msra.mxu0 0
        %792 = vmatprep.subr.bf16.mxu0 0
        %793 = vmatpush1.bf16.msra.mxu0 0
        %794 = vmatprep.subr.bf16.mxu0 0
        %795 = vmatpush1.bf16.msra.mxu0 %v737
        %796 = vmatprep.subr.bf16.mxu0 0
        %797 = vmatpush2.bf16.msra.mxu0 0
        %798 = vmatprep.subr.bf16.mxu0 0
        %799 = vmatpush2.bf16.msra.mxu0 0
        %800 = vmatprep.subr.bf16.mxu0 0
        %801 = vmatpush2.bf16.msra.mxu0 0
        %802 = vmatprep.subr.bf16.mxu0 0
        %803 = vmatpush2.bf16.msra.mxu0 0
        %804 = vmatprep.subr.bf16.mxu0 0
        %805 = vmatpush2.bf16.msra.mxu0 0
        %806 = vmatprep.subr.bf16.mxu0 0
        %807 = vmatpush2.bf16.msra.mxu0 0
        %808 = vmatprep.subr.bf16.mxu0 0
        %809 = vmatpush2.bf16.msra.mxu0 0
        %810 = vmatprep.subr.bf16.mxu0 0
        %811 = vmatpush2.bf16.msra.mxu0 0
        %812 = vmatprep.mubr.bf16.mxu0 0
        %813 = vmatmul.mubr.bf16.gmra.mxu0 %v728
        %v814 = vpop.f32.mrf.mxu0
        %v815 = vadd.f32 0.0, %v814
        %v816 = vpop.f32.mrf.mxu0
        %v817 = vpop.f32.mrf.mxu0
        %v818 = vpop.f32.mrf.mxu0
        %819 = vdwg.mxu0
        %v820 = vadd.f32 %v667, %v774
        %v821 = vadd.f32 %v669, %v776
        %v822 = vadd.f32 %v708, %v815
        %s823 = scalar_lea.vmem %s4, 12
        %v824 = vld [vmem:[%s823] sm:$0xf]
        %825 = vrot.lane.b32.xlu0 %v497, 1
        %v826 = vpop.permute.xlu0 %825
        %827 = vrot.lane.b32.xlu0 %v498, 1
        %v828 = vpop.permute.xlu0 %827
        %829 = vrot.lane.b32.xlu0 %v499, 1
        %v830 = vpop.permute.xlu0 %829
        %831 = vrot.lane.b32.xlu0 %v500, 1
        %v832 = vpop.permute.xlu0 %831
        %vm833 = vcmask 7168
        %v834 = vsel %vm833, %v826, %v828
        %v835 = vsel %vm833, %v828, %v830
        %v836 = vsel %vm833, %v830, %v832
        %v838 = vsel %vm513, %v824, 0
        %v841 = vsel %vm517, %v834, 0
        %v844 = vsel %vm517, %v835, 0
        %v847 = vsel %vm517, %v836, 0
        %849 = vmatprep.subr.bf16.mxu0 0
        %850 = vmatpush1.bf16.msra.mxu0 0
        %851 = vmatprep.subr.bf16.mxu0 0
        %852 = vmatpush1.bf16.msra.mxu0 0
        %853 = vmatprep.subr.bf16.mxu0 0
        %854 = vmatpush1.bf16.msra.mxu0 0
        %855 = vmatprep.subr.bf16.mxu0 0
        %856 = vmatpush1.bf16.msra.mxu0 0
        %857 = vmatprep.subr.bf16.mxu0 0
        %858 = vmatpush1.bf16.msra.mxu0 0
        %859 = vmatprep.subr.bf16.mxu0 0
        %860 = vmatpush1.bf16.msra.mxu0 0
        %861 = vmatprep.subr.bf16.mxu0 0
        %862 = vmatpush1.bf16.msra.mxu0 0
        %863 = vmatprep.subr.bf16.mxu0 %v844
        %864 = vmatpush1.bf16.msra.mxu0 %v841
        %865 = vmatprep.subr.bf16.mxu0 0
        %866 = vmatpush2.bf16.msra.mxu0 0
        %867 = vmatprep.subr.bf16.mxu0 0
        %868 = vmatpush2.bf16.msra.mxu0 0
        %869 = vmatprep.subr.bf16.mxu0 0
        %870 = vmatpush2.bf16.msra.mxu0 0
        %871 = vmatprep.subr.bf16.mxu0 0
        %872 = vmatpush2.bf16.msra.mxu0 0
        %873 = vmatprep.subr.bf16.mxu0 0
        %874 = vmatpush2.bf16.msra.mxu0 0
        %875 = vmatprep.subr.bf16.mxu0 0
        %876 = vmatpush2.bf16.msra.mxu0 0
        %877 = vmatprep.subr.bf16.mxu0 0
        %878 = vmatpush2.bf16.msra.mxu0 0
        %879 = vmatprep.subr.bf16.mxu0 0
        %880 = vmatpush2.bf16.msra.mxu0 0
        %881 = vmatprep.mubr.bf16.mxu0 0
        %882 = vmatmul.mubr.bf16.gmra.mxu0 %v838
        %v883 = vpop.f32.mrf.mxu0
        %v884 = vadd.f32 0.0, %v883
        %v885 = vpop.f32.mrf.mxu0
        %v886 = vadd.f32 0.0, %v885
        %v887 = vpop.f32.mrf.mxu0
        %v888 = vpop.f32.mrf.mxu0
        %889 = vdwg.mxu0
        %890 = vmatprep.subr.bf16.mxu0 0
        %891 = vmatpush1.bf16.msra.mxu0 0
        %892 = vmatprep.subr.bf16.mxu0 0
        %893 = vmatpush1.bf16.msra.mxu0 0
        %894 = vmatprep.subr.bf16.mxu0 0
        %895 = vmatpush1.bf16.msra.mxu0 0
        %896 = vmatprep.subr.bf16.mxu0 0
        %897 = vmatpush1.bf16.msra.mxu0 0
        %898 = vmatprep.subr.bf16.mxu0 0
        %899 = vmatpush1.bf16.msra.mxu0 0
        %900 = vmatprep.subr.bf16.mxu0 0
        %901 = vmatpush1.bf16.msra.mxu0 0
        %902 = vmatprep.subr.bf16.mxu0 0
        %903 = vmatpush1.bf16.msra.mxu0 0
        %904 = vmatprep.subr.bf16.mxu0 0
        %905 = vmatpush1.bf16.msra.mxu0 %v847
        %906 = vmatprep.subr.bf16.mxu0 0
        %907 = vmatpush2.bf16.msra.mxu0 0
        %908 = vmatprep.subr.bf16.mxu0 0
        %909 = vmatpush2.bf16.msra.mxu0 0
        %910 = vmatprep.subr.bf16.mxu0 0
        %911 = vmatpush2.bf16.msra.mxu0 0
        %912 = vmatprep.subr.bf16.mxu0 0
        %913 = vmatpush2.bf16.msra.mxu0 0
        %914 = vmatprep.subr.bf16.mxu0 0
        %915 = vmatpush2.bf16.msra.mxu0 0
        %916 = vmatprep.subr.bf16.mxu0 0
        %917 = vmatpush2.bf16.msra.mxu0 0
        %918 = vmatprep.subr.bf16.mxu0 0
        %919 = vmatpush2.bf16.msra.mxu0 0
        %920 = vmatprep.subr.bf16.mxu0 0
        %921 = vmatpush2.bf16.msra.mxu0 0
        %922 = vmatprep.mubr.bf16.mxu0 0
        %923 = vmatmul.mubr.bf16.gmra.mxu0 %v838
        %v924 = vpop.f32.mrf.mxu0
        %v925 = vadd.f32 0.0, %v924
        %v926 = vpop.f32.mrf.mxu0
        %v927 = vpop.f32.mrf.mxu0
        %v928 = vpop.f32.mrf.mxu0
        %929 = vdwg.mxu0
        %v930 = vadd.f32 %v820, %v884
        %v931 = vadd.f32 %v821, %v886
        %v932 = vadd.f32 %v822, %v925
        %s933 = scalar_lea.vmem %s4, 16
        %v934 = vld [vmem:[%s933] sm:$0xf]
        %v935 = vld [vmem:[#allocation2 + $0x4] sm:$0xff]
        %v936 = vld [vmem:[#allocation2 + $0xc] sm:$0xf]
        %v939 = vunpack.c.l.b16 %v935
        %v940 = vunpack.c.h.b16 %v935
        %v941 = vunpack.c.l.b16 %v936
        %v942 = vpack.c.b16 %v939, %v939
        %v943 = vpack.c.b16 %v940, %v940
        %v944 = vpack.c.b16 %v941, %v941
        %v946 = vsel %vm513, %v934, 0
        %v949 = vsel %vm517, %v942, 0
        %v952 = vsel %vm517, %v943, 0
        %v955 = vsel %vm517, %v944, 0
        %957 = vmatprep.subr.bf16.mxu0 0
        %958 = vmatpush1.bf16.msra.mxu0 0
        %959 = vmatprep.subr.bf16.mxu0 0
        %960 = vmatpush1.bf16.msra.mxu0 0
        %961 = vmatprep.subr.bf16.mxu0 0
        %962 = vmatpush1.bf16.msra.mxu0 0
        %963 = vmatprep.subr.bf16.mxu0 0
        %964 = vmatpush1.bf16.msra.mxu0 0
        %965 = vmatprep.subr.bf16.mxu0 0
        %966 = vmatpush1.bf16.msra.mxu0 0
        %967 = vmatprep.subr.bf16.mxu0 0
        %968 = vmatpush1.bf16.msra.mxu0 0
        %969 = vmatprep.subr.bf16.mxu0 0
        %970 = vmatpush1.bf16.msra.mxu0 0
        %971 = vmatprep.subr.bf16.mxu0 %v952
        %972 = vmatpush1.bf16.msra.mxu0 %v949
        %973 = vmatprep.subr.bf16.mxu0 0
        %974 = vmatpush2.bf16.msra.mxu0 0
        %975 = vmatprep.subr.bf16.mxu0 0
        %976 = vmatpush2.bf16.msra.mxu0 0
        %977 = vmatprep.subr.bf16.mxu0 0
        %978 = vmatpush2.bf16.msra.mxu0 0
        %979 = vmatprep.subr.bf16.mxu0 0
        %980 = vmatpush2.bf16.msra.mxu0 0
        %981 = vmatprep.subr.bf16.mxu0 0
        %982 = vmatpush2.bf16.msra.mxu0 0
        %983 = vmatprep.subr.bf16.mxu0 0
        %984 = vmatpush2.bf16.msra.mxu0 0
        %985 = vmatprep.subr.bf16.mxu0 0
        %986 = vmatpush2.bf16.msra.mxu0 0
        %987 = vmatprep.subr.bf16.mxu0 0
        %988 = vmatpush2.bf16.msra.mxu0 0
        %989 = vmatprep.mubr.bf16.mxu0 0
        %990 = vmatmul.mubr.bf16.gmra.mxu0 %v946
        %v991 = vpop.f32.mrf.mxu0
        %v992 = vadd.f32 0.0, %v991
        %v993 = vpop.f32.mrf.mxu0
        %v994 = vadd.f32 0.0, %v993
        %v995 = vpop.f32.mrf.mxu0
        %v996 = vpop.f32.mrf.mxu0
        %997 = vdwg.mxu0
        %998 = vmatprep.subr.bf16.mxu0 0
        %999 = vmatpush1.bf16.msra.mxu0 0
        %1000 = vmatprep.subr.bf16.mxu0 0
        %1001 = vmatpush1.bf16.msra.mxu0 0
        %1002 = vmatprep.subr.bf16.mxu0 0
        %1003 = vmatpush1.bf16.msra.mxu0 0
        %1004 = vmatprep.subr.bf16.mxu0 0
        %1005 = vmatpush1.bf16.msra.mxu0 0
        %1006 = vmatprep.subr.bf16.mxu0 0
        %1007 = vmatpush1.bf16.msra.mxu0 0
        %1008 = vmatprep.subr.bf16.mxu0 0
        %1009 = vmatpush1.bf16.msra.mxu0 0
        %1010 = vmatprep.subr.bf16.mxu0 0
        %1011 = vmatpush1.bf16.msra.mxu0 0
        %1012 = vmatprep.subr.bf16.mxu0 0
        %1013 = vmatpush1.bf16.msra.mxu0 %v955
        %1014 = vmatprep.subr.bf16.mxu0 0
        %1015 = vmatpush2.bf16.msra.mxu0 0
        %1016 = vmatprep.subr.bf16.mxu0 0
        %1017 = vmatpush2.bf16.msra.mxu0 0
        %1018 = vmatprep.subr.bf16.mxu0 0
        %1019 = vmatpush2.bf16.msra.mxu0 0
        %1020 = vmatprep.subr.bf16.mxu0 0
        %1021 = vmatpush2.bf16.msra.mxu0 0
        %1022 = vmatprep.subr.bf16.mxu0 0
        %1023 = vmatpush2.bf16.msra.mxu0 0
        %1024 = vmatprep.subr.bf16.mxu0 0
        %1025 = vmatpush2.bf16.msra.mxu0 0
        %1026 = vmatprep.subr.bf16.mxu0 0
        %1027 = vmatpush2.bf16.msra.mxu0 0
        %1028 = vmatprep.subr.bf16.mxu0 0
        %1029 = vmatpush2.bf16.msra.mxu0 0
        %1030 = vmatprep.mubr.bf16.mxu0 0
        %1031 = vmatmul.mubr.bf16.gmra.mxu0 %v946
        %v1032 = vpop.f32.mrf.mxu0
        %v1033 = vadd.f32 0.0, %v1032
        %v1034 = vpop.f32.mrf.mxu0
        %v1035 = vpop.f32.mrf.mxu0
        %v1036 = vpop.f32.mrf.mxu0
        %1037 = vdwg.mxu0
        %v1038 = vadd.f32 %v930, %v992
        %v1039 = vadd.f32 %v931, %v994
        %v1040 = vadd.f32 %v932, %v1033
        %s1041 = scalar_lea.vmem %s4, 20
        %v1042 = vld [vmem:[%s1041] sm:$0xf]
        %1043 = vrot.lane.b32.xlu0 %v942, 127
        %v1044 = vpop.permute.xlu0 %1043
        %1045 = vrot.lane.b32.xlu0 %v943, 127
        %v1046 = vpop.permute.xlu0 %1045
        %1047 = vrot.lane.b32.xlu0 %v944, 127
        %v1048 = vpop.permute.xlu0 %1047
        %vm1049 = vcmask 1039360
        %v1050 = vsel %vm1049, %v1044, %v1046
        %v1051 = vsel %vm1049, %v1046, %v1048
        %v1053 = vsel %vm513, %v1042, 0
        %v1056 = vsel %vm517, %v1050, 0
        %v1059 = vsel %vm517, %v1051, 0
        %v1062 = vsel %vm517, %v1048, 0
        %1064 = vmatprep.subr.bf16.mxu0 0
        %1065 = vmatpush1.bf16.msra.mxu0 0
        %1066 = vmatprep.subr.bf16.mxu0 0
        %1067 = vmatpush1.bf16.msra.mxu0 0
        %1068 = vmatprep.subr.bf16.mxu0 0
        %1069 = vmatpush1.bf16.msra.mxu0 0
        %1070 = vmatprep.subr.bf16.mxu0 0
        %1071 = vmatpush1.bf16.msra.mxu0 0
        %1072 = vmatprep.subr.bf16.mxu0 0
        %1073 = vmatpush1.bf16.msra.mxu0 0
        %1074 = vmatprep.subr.bf16.mxu0 0
        %1075 = vmatpush1.bf16.msra.mxu0 0
        %1076 = vmatprep.subr.bf16.mxu0 0
        %1077 = vmatpush1.bf16.msra.mxu0 0
        %1078 = vmatprep.subr.bf16.mxu0 %v1059
        %1079 = vmatpush1.bf16.msra.mxu0 %v1056
        %1080 = vmatprep.subr.bf16.mxu0 0
        %1081 = vmatpush2.bf16.msra.mxu0 0
        %1082 = vmatprep.subr.bf16.mxu0 0
        %1083 = vmatpush2.bf16.msra.mxu0 0
        %1084 = vmatprep.subr.bf16.mxu0 0
        %1085 = vmatpush2.bf16.msra.mxu0 0
        %1086 = vmatprep.subr.bf16.mxu0 0
        %1087 = vmatpush2.bf16.msra.mxu0 0
        %1088 = vmatprep.subr.bf16.mxu0 0
        %1089 = vmatpush2.bf16.msra.mxu0 0
        %1090 = vmatprep.subr.bf16.mxu0 0
        %1091 = vmatpush2.bf16.msra.mxu0 0
        %1092 = vmatprep.subr.bf16.mxu0 0
        %1093 = vmatpush2.bf16.msra.mxu0 0
        %1094 = vmatprep.subr.bf16.mxu0 0
        %1095 = vmatpush2.bf16.msra.mxu0 0
        %1096 = vmatprep.mubr.bf16.mxu0 0
        %1097 = vmatmul.mubr.bf16.gmra.mxu0 %v1053
        %v1098 = vpop.f32.mrf.mxu0
        %v1099 = vadd.f32 0.0, %v1098
        %v1100 = vpop.f32.mrf.mxu0
        %v1101 = vadd.f32 0.0, %v1100
        %v1102 = vpop.f32.mrf.mxu0
        %v1103 = vpop.f32.mrf.mxu0
        %1104 = vdwg.mxu0
        %1105 = vmatprep.subr.bf16.mxu0 0
        %1106 = vmatpush1.bf16.msra.mxu0 0
        %1107 = vmatprep.subr.bf16.mxu0 0
        %1108 = vmatpush1.bf16.msra.mxu0 0
        %1109 = vmatprep.subr.bf16.mxu0 0
        %1110 = vmatpush1.bf16.msra.mxu0 0
        %1111 = vmatprep.subr.bf16.mxu0 0
        %1112 = vmatpush1.bf16.msra.mxu0 0
        %1113 = vmatprep.subr.bf16.mxu0 0
        %1114 = vmatpush1.bf16.msra.mxu0 0
        %1115 = vmatprep.subr.bf16.mxu0 0
        %1116 = vmatpush1.bf16.msra.mxu0 0
        %1117 = vmatprep.subr.bf16.mxu0 0
        %1118 = vmatpush1.bf16.msra.mxu0 0
        %1119 = vmatprep.subr.bf16.mxu0 0
        %1120 = vmatpush1.bf16.msra.mxu0 %v1062
        %1121 = vmatprep.subr.bf16.mxu0 0
        %1122 = vmatpush2.bf16.msra.mxu0 0
        %1123 = vmatprep.subr.bf16.mxu0 0
        %1124 = vmatpush2.bf16.msra.mxu0 0
        %1125 = vmatprep.subr.bf16.mxu0 0
        %1126 = vmatpush2.bf16.msra.mxu0 0
        %1127 = vmatprep.subr.bf16.mxu0 0
        %1128 = vmatpush2.bf16.msra.mxu0 0
        %1129 = vmatprep.subr.bf16.mxu0 0
        %1130 = vmatpush2.bf16.msra.mxu0 0
        %1131 = vmatprep.subr.bf16.mxu0 0
        %1132 = vmatpush2.bf16.msra.mxu0 0
        %1133 = vmatprep.subr.bf16.mxu0 0
        %1134 = vmatpush2.bf16.msra.mxu0 0
        %1135 = vmatprep.subr.bf16.mxu0 0
        %1136 = vmatpush2.bf16.msra.mxu0 0
        %1137 = vmatprep.mubr.bf16.mxu0 0
        %1138 = vmatmul.mubr.bf16.gmra.mxu0 %v1053
        %v1139 = vpop.f32.mrf.mxu0
        %v1140 = vadd.f32 0.0, %v1139
        %v1141 = vpop.f32.mrf.mxu0
        %v1142 = vpop.f32.mrf.mxu0
        %v1143 = vpop.f32.mrf.mxu0
        %1144 = vdwg.mxu0
        %v1145 = vadd.f32 %v1038, %v1099
        %v1146 = vadd.f32 %v1039, %v1101
        %v1147 = vadd.f32 %v1040, %v1140
        %s1148 = scalar_lea.vmem %s4, 24
        %v1149 = vld [vmem:[%s1148] sm:$0xf]
        %1150 = vrot.lane.b32.xlu0 %v942, 109
        %v1151 = vpop.permute.xlu0 %1150
        %1152 = vrot.lane.b32.xlu0 %v943, 109
        %v1153 = vpop.permute.xlu0 %1152
        %1154 = vrot.lane.b32.xlu0 %v944, 109
        %v1155 = vpop.permute.xlu0 %1154
        %vm1156 = vcmask 891904
        %v1157 = vsel %vm1156, %v1151, %v1153
        %v1158 = vsel %vm1156, %v1153, %v1155
        %v1160 = vsel %vm513, %v1149, 0
        %v1163 = vsel %vm517, %v1157, 0
        %v1166 = vsel %vm517, %v1158, 0
        %v1169 = vsel %vm517, %v1155, 0
        %1171 = vmatprep.subr.bf16.mxu0 0
        %1172 = vmatpush1.bf16.msra.mxu0 0
        %1173 = vmatprep.subr.bf16.mxu0 0
        %1174 = vmatpush1.bf16.msra.mxu0 0
        %1175 = vmatprep.subr.bf16.mxu0 0
        %1176 = vmatpush1.bf16.msra.mxu0 0
        %1177 = vmatprep.subr.bf16.mxu0 0
        %1178 = vmatpush1.bf16.msra.mxu0 0
        %1179 = vmatprep.subr.bf16.mxu0 0
        %1180 = vmatpush1.bf16.msra.mxu0 0
        %1181 = vmatprep.subr.bf16.mxu0 0
        %1182 = vmatpush1.bf16.msra.mxu0 0
        %1183 = vmatprep.subr.bf16.mxu0 0
        %1184 = vmatpush1.bf16.msra.mxu0 0
        %1185 = vmatprep.subr.bf16.mxu0 %v1166
        %1186 = vmatpush1.bf16.msra.mxu0 %v1163
        %1187 = vmatprep.subr.bf16.mxu0 0
        %1188 = vmatpush2.bf16.msra.mxu0 0
        %1189 = vmatprep.subr.bf16.mxu0 0
        %1190 = vmatpush2.bf16.msra.mxu0 0
        %1191 = vmatprep.subr.bf16.mxu0 0
        %1192 = vmatpush2.bf16.msra.mxu0 0
        %1193 = vmatprep.subr.bf16.mxu0 0
        %1194 = vmatpush2.bf16.msra.mxu0 0
        %1195 = vmatprep.subr.bf16.mxu0 0
        %1196 = vmatpush2.bf16.msra.mxu0 0
        %1197 = vmatprep.subr.bf16.mxu0 0
        %1198 = vmatpush2.bf16.msra.mxu0 0
        %1199 = vmatprep.subr.bf16.mxu0 0
        %1200 = vmatpush2.bf16.msra.mxu0 0
        %1201 = vmatprep.subr.bf16.mxu0 0
        %1202 = vmatpush2.bf16.msra.mxu0 0
        %1203 = vmatprep.mubr.bf16.mxu0 0
        %1204 = vmatmul.mubr.bf16.gmra.mxu0 %v1160
        %v1205 = vpop.f32.mrf.mxu0
        %v1206 = vadd.f32 0.0, %v1205
        %v1207 = vpop.f32.mrf.mxu0
        %v1208 = vadd.f32 0.0, %v1207
        %v1209 = vpop.f32.mrf.mxu0
        %v1210 = vpop.f32.mrf.mxu0
        %1211 = vdwg.mxu0
        %1212 = vmatprep.subr.bf16.mxu0 0
        %1213 = vmatpush1.bf16.msra.mxu0 0
        %1214 = vmatprep.subr.bf16.mxu0 0
        %1215 = vmatpush1.bf16.msra.mxu0 0
        %1216 = vmatprep.subr.bf16.mxu0 0
        %1217 = vmatpush1.bf16.msra.mxu0 0
        %1218 = vmatprep.subr.bf16.mxu0 0
        %1219 = vmatpush1.bf16.msra.mxu0 0
        %1220 = vmatprep.subr.bf16.mxu0 0
        %1221 = vmatpush1.bf16.msra.mxu0 0
        %1222 = vmatprep.subr.bf16.mxu0 0
        %1223 = vmatpush1.bf16.msra.mxu0 0
        %1224 = vmatprep.subr.bf16.mxu0 0
        %1225 = vmatpush1.bf16.msra.mxu0 0
        %1226 = vmatprep.subr.bf16.mxu0 0
        %1227 = vmatpush1.bf16.msra.mxu0 %v1169
        %1228 = vmatprep.subr.bf16.mxu0 0
        %1229 = vmatpush2.bf16.msra.mxu0 0
        %1230 = vmatprep.subr.bf16.mxu0 0
        %1231 = vmatpush2.bf16.msra.mxu0 0
        %1232 = vmatprep.subr.bf16.mxu0 0
        %1233 = vmatpush2.bf16.msra.mxu0 0
        %1234 = vmatprep.subr.bf16.mxu0 0
        %1235 = vmatpush2.bf16.msra.mxu0 0
        %1236 = vmatprep.subr.bf16.mxu0 0
        %1237 = vmatpush2.bf16.msra.mxu0 0
        %1238 = vmatprep.subr.bf16.mxu0 0
        %1239 = vmatpush2.bf16.msra.mxu0 0
        %1240 = vmatprep.subr.bf16.mxu0 0
        %1241 = vmatpush2.bf16.msra.mxu0 0
        %1242 = vmatprep.subr.bf16.mxu0 0
        %1243 = vmatpush2.bf16.msra.mxu0 0
        %1244 = vmatprep.mubr.bf16.mxu0 0
        %1245 = vmatmul.mubr.bf16.gmra.mxu0 %v1160
        %v1246 = vpop.f32.mrf.mxu0
        %v1247 = vadd.f32 0.0, %v1246
        %v1248 = vpop.f32.mrf.mxu0
        %v1249 = vpop.f32.mrf.mxu0
        %v1250 = vpop.f32.mrf.mxu0
        %1251 = vdwg.mxu0
        %v1252 = vadd.f32 %v1145, %v1206
        %v1253 = vadd.f32 %v1146, %v1208
        %v1254 = vadd.f32 %v1147, %v1247
        %s1255 = scalar_lea.vmem %s4, 28
        %v1256 = vld [vmem:[%s1255] sm:$0xf]
        %1257 = vrot.lane.b32.xlu0 %v942, 108
        %v1258 = vpop.permute.xlu0 %1257
        %1259 = vrot.lane.b32.xlu0 %v943, 108
        %v1260 = vpop.permute.xlu0 %1259
        %1261 = vrot.lane.b32.xlu0 %v944, 108
        %v1262 = vpop.permute.xlu0 %1261
        %vm1263 = vcmask 883712
        %v1264 = vsel %vm1263, %v1258, %v1260
        %v1265 = vsel %vm1263, %v1260, %v1262
        %v1267 = vsel %vm513, %v1256, 0
        %v1270 = vsel %vm517, %v1264, 0
        %v1273 = vsel %vm517, %v1265, 0
        %v1276 = vsel %vm517, %v1262, 0
        %1278 = vmatprep.subr.bf16.mxu0 0
        %1279 = vmatpush1.bf16.msra.mxu0 0
        %1280 = vmatprep.subr.bf16.mxu0 0
        %1281 = vmatpush1.bf16.msra.mxu0 0
        %1282 = vmatprep.subr.bf16.mxu0 0
        %1283 = vmatpush1.bf16.msra.mxu0 0
        %1284 = vmatprep.subr.bf16.mxu0 0
        %1285 = vmatpush1.bf16.msra.mxu0 0
        %1286 = vmatprep.subr.bf16.mxu0 0
        %1287 = vmatpush1.bf16.msra.mxu0 0
        %1288 = vmatprep.subr.bf16.mxu0 0
        %1289 = vmatpush1.bf16.msra.mxu0 0
        %1290 = vmatprep.subr.bf16.mxu0 0
        %1291 = vmatpush1.bf16.msra.mxu0 0
        %1292 = vmatprep.subr.bf16.mxu0 %v1273
        %1293 = vmatpush1.bf16.msra.mxu0 %v1270
        %1294 = vmatprep.subr.bf16.mxu0 0
        %1295 = vmatpush2.bf16.msra.mxu0 0
        %1296 = vmatprep.subr.bf16.mxu0 0
        %1297 = vmatpush2.bf16.msra.mxu0 0
        %1298 = vmatprep.subr.bf16.mxu0 0
        %1299 = vmatpush2.bf16.msra.mxu0 0
        %1300 = vmatprep.subr.bf16.mxu0 0
        %1301 = vmatpush2.bf16.msra.mxu0 0
        %1302 = vmatprep.subr.bf16.mxu0 0
        %1303 = vmatpush2.bf16.msra.mxu0 0
        %1304 = vmatprep.subr.bf16.mxu0 0
        %1305 = vmatpush2.bf16.msra.mxu0 0
        %1306 = vmatprep.subr.bf16.mxu0 0
        %1307 = vmatpush2.bf16.msra.mxu0 0
        %1308 = vmatprep.subr.bf16.mxu0 0
        %1309 = vmatpush2.bf16.msra.mxu0 0
        %1310 = vmatprep.mubr.bf16.mxu0 0
        %1311 = vmatmul.mubr.bf16.gmra.mxu0 %v1267
        %v1312 = vpop.f32.mrf.mxu0
        %v1313 = vadd.f32 0.0, %v1312
        %v1314 = vpop.f32.mrf.mxu0
        %v1315 = vadd.f32 0.0, %v1314
        %v1316 = vpop.f32.mrf.mxu0
        %v1317 = vpop.f32.mrf.mxu0
        %1318 = vdwg.mxu0
        %1319 = vmatprep.subr.bf16.mxu0 0
        %1320 = vmatpush1.bf16.msra.mxu0 0
        %1321 = vmatprep.subr.bf16.mxu0 0
        %1322 = vmatpush1.bf16.msra.mxu0 0
        %1323 = vmatprep.subr.bf16.mxu0 0
        %1324 = vmatpush1.bf16.msra.mxu0 0
        %1325 = vmatprep.subr.bf16.mxu0 0
        %1326 = vmatpush1.bf16.msra.mxu0 0
        %1327 = vmatprep.subr.bf16.mxu0 0
        %1328 = vmatpush1.bf16.msra.mxu0 0
        %1329 = vmatprep.subr.bf16.mxu0 0
        %1330 = vmatpush1.bf16.msra.mxu0 0
        %1331 = vmatprep.subr.bf16.mxu0 0
        %1332 = vmatpush1.bf16.msra.mxu0 0
        %1333 = vmatprep.subr.bf16.mxu0 0
        %1334 = vmatpush1.bf16.msra.mxu0 %v1276
        %1335 = vmatprep.subr.bf16.mxu0 0
        %1336 = vmatpush2.bf16.msra.mxu0 0
        %1337 = vmatprep.subr.bf16.mxu0 0
        %1338 = vmatpush2.bf16.msra.mxu0 0
        %1339 = vmatprep.subr.bf16.mxu0 0
        %1340 = vmatpush2.bf16.msra.mxu0 0
        %1341 = vmatprep.subr.bf16.mxu0 0
        %1342 = vmatpush2.bf16.msra.mxu0 0
        %1343 = vmatprep.subr.bf16.mxu0 0
        %1344 = vmatpush2.bf16.msra.mxu0 0
        %1345 = vmatprep.subr.bf16.mxu0 0
        %1346 = vmatpush2.bf16.msra.mxu0 0
        %1347 = vmatprep.subr.bf16.mxu0 0
        %1348 = vmatpush2.bf16.msra.mxu0 0
        %1349 = vmatprep.subr.bf16.mxu0 0
        %1350 = vmatpush2.bf16.msra.mxu0 0
        %1351 = vmatprep.mubr.bf16.mxu0 0
        %1352 = vmatmul.mubr.bf16.gmra.mxu0 %v1267
        %v1353 = vpop.f32.mrf.mxu0
        %v1354 = vadd.f32 0.0, %v1353
        %v1355 = vpop.f32.mrf.mxu0
        %v1356 = vpop.f32.mrf.mxu0
        %v1357 = vpop.f32.mrf.mxu0
        %1358 = vdwg.mxu0
        %v1359 = vadd.f32 %v1252, %v1313
        %v1360 = vadd.f32 %v1253, %v1315
        %v1361 = vadd.f32 %v1254, %v1354
        %s1362 = scalar_lea.vmem %s4, 32
        %v1363 = vld [vmem:[%s1362] sm:$0xf]
        %1364 = vrot.lane.b32.xlu0 %v942, 107
        %v1365 = vpop.permute.xlu0 %1364
        %1366 = vrot.lane.b32.xlu0 %v943, 107
        %v1367 = vpop.permute.xlu0 %1366
        %1368 = vrot.lane.b32.xlu0 %v944, 107
        %v1369 = vpop.permute.xlu0 %1368
        %vm1370 = vcmask 875520
        %v1371 = vsel %vm1370, %v1365, %v1367
        %v1372 = vsel %vm1370, %v1367, %v1369
        %v1374 = vsel %vm513, %v1363, 0
        %v1377 = vsel %vm517, %v1371, 0
        %v1380 = vsel %vm517, %v1372, 0
        %v1383 = vsel %vm517, %v1369, 0
        %1385 = vmatprep.subr.bf16.mxu0 0
        %1386 = vmatpush1.bf16.msra.mxu0 0
        %1387 = vmatprep.subr.bf16.mxu0 0
        %1388 = vmatpush1.bf16.msra.mxu0 0
        %1389 = vmatprep.subr.bf16.mxu0 0
        %1390 = vmatpush1.bf16.msra.mxu0 0
        %1391 = vmatprep.subr.bf16.mxu0 0
        %1392 = vmatpush1.bf16.msra.mxu0 0
        %1393 = vmatprep.subr.bf16.mxu0 0
        %1394 = vmatpush1.bf16.msra.mxu0 0
        %1395 = vmatprep.subr.bf16.mxu0 0
        %1396 = vmatpush1.bf16.msra.mxu0 0
        %1397 = vmatprep.subr.bf16.mxu0 0
        %1398 = vmatpush1.bf16.msra.mxu0 0
        %1399 = vmatprep.subr.bf16.mxu0 %v1380
        %1400 = vmatpush1.bf16.msra.mxu0 %v1377
        %1401 = vmatprep.subr.bf16.mxu0 0
        %1402 = vmatpush2.bf16.msra.mxu0 0
        %1403 = vmatprep.subr.bf16.mxu0 0
        %1404 = vmatpush2.bf16.msra.mxu0 0
        %1405 = vmatprep.subr.bf16.mxu0 0
        %1406 = vmatpush2.bf16.msra.mxu0 0
        %1407 = vmatprep.subr.bf16.mxu0 0
        %1408 = vmatpush2.bf16.msra.mxu0 0
        %1409 = vmatprep.subr.bf16.mxu0 0
        %1410 = vmatpush2.bf16.msra.mxu0 0
        %1411 = vmatprep.subr.bf16.mxu0 0
        %1412 = vmatpush2.bf16.msra.mxu0 0
        %1413 = vmatprep.subr.bf16.mxu0 0
        %1414 = vmatpush2.bf16.msra.mxu0 0
        %1415 = vmatprep.subr.bf16.mxu0 0
        %1416 = vmatpush2.bf16.msra.mxu0 0
        %1417 = vmatprep.mubr.bf16.mxu0 0
        %1418 = vmatmul.mubr.bf16.gmra.mxu0 %v1374
        %v1419 = vpop.f32.mrf.mxu0
        %v1420 = vadd.f32 0.0, %v1419
        %v1421 = vpop.f32.mrf.mxu0
        %v1422 = vadd.f32 0.0, %v1421
        %v1423 = vpop.f32.mrf.mxu0
        %v1424 = vpop.f32.mrf.mxu0
        %1425 = vdwg.mxu0
        %1426 = vmatprep.subr.bf16.mxu0 0
        %1427 = vmatpush1.bf16.msra.mxu0 0
        %1428 = vmatprep.subr.bf16.mxu0 0
        %1429 = vmatpush1.bf16.msra.mxu0 0
        %1430 = vmatprep.subr.bf16.mxu0 0
        %1431 = vmatpush1.bf16.msra.mxu0 0
        %1432 = vmatprep.subr.bf16.mxu0 0
        %1433 = vmatpush1.bf16.msra.mxu0 0
        %1434 = vmatprep.subr.bf16.mxu0 0
        %1435 = vmatpush1.bf16.msra.mxu0 0
        %1436 = vmatprep.subr.bf16.mxu0 0
        %1437 = vmatpush1.bf16.msra.mxu0 0
        %1438 = vmatprep.subr.bf16.mxu0 0
        %1439 = vmatpush1.bf16.msra.mxu0 0
        %1440 = vmatprep.subr.bf16.mxu0 0
        %1441 = vmatpush1.bf16.msra.mxu0 %v1383
        %1442 = vmatprep.subr.bf16.mxu0 0
        %1443 = vmatpush2.bf16.msra.mxu0 0
        %1444 = vmatprep.subr.bf16.mxu0 0
        %1445 = vmatpush2.bf16.msra.mxu0 0
        %1446 = vmatprep.subr.bf16.mxu0 0
        %1447 = vmatpush2.bf16.msra.mxu0 0
        %1448 = vmatprep.subr.bf16.mxu0 0
        %1449 = vmatpush2.bf16.msra.mxu0 0
        %1450 = vmatprep.subr.bf16.mxu0 0
        %1451 = vmatpush2.bf16.msra.mxu0 0
        %1452 = vmatprep.subr.bf16.mxu0 0
        %1453 = vmatpush2.bf16.msra.mxu0 0
        %1454 = vmatprep.subr.bf16.mxu0 0
        %1455 = vmatpush2.bf16.msra.mxu0 0
        %1456 = vmatprep.subr.bf16.mxu0 0
        %1457 = vmatpush2.bf16.msra.mxu0 0
        %1458 = vmatprep.mubr.bf16.mxu0 0
        %1459 = vmatmul.mubr.bf16.gmra.mxu0 %v1374
        %v1460 = vpop.f32.mrf.mxu0
        %v1461 = vadd.f32 0.0, %v1460
        %v1462 = vpop.f32.mrf.mxu0
        %v1463 = vpop.f32.mrf.mxu0
        %v1464 = vpop.f32.mrf.mxu0
        %1465 = vdwg.mxu0
        %v1466 = vadd.f32 %v1359, %v1420
        %v1467 = vadd.f32 %v1360, %v1422
        %v1468 = vadd.f32 %v1361, %v1461
        %v1469 = vld [vmem:[%s5] sm:$0xff]
        %1471 = vset.pattern.permute.xlu0 0
        %1472 = vperm.xlu0 %1471, %v1469
        %v1473 = vpop.permute.xlu0 %1472
        %v1475 = vadd.f32 %v1466, %v1473
        %v1476 = vadd.f32 %v1467, %v1473
        %v1477 = vadd.f32 %v1468, %v1473
        %vm1478 = vcmp.gt.f32.partialorder %v1475, 0.0
        %vm1479 = vcmp.gt.f32.partialorder %v1476, 0.0
        %vm1480 = vcmp.gt.f32.partialorder %v1477, 0.0
        %v1481 = vmul.f32 %v1475, 0.01
        %v1482 = vmul.f32 %v1476, 0.01
        %v1483 = vmul.f32 %v1477, 0.01
        %v1484 = vsel %vm1478, %v1475, %v1481
        %v1485 = vsel %vm1479, %v1476, %v1482
        %v1486 = vsel %vm1480, %v1477, %v1483
        %v1487 = vmul.f32 %v1484, %v453
        %v1488 = vmul.f32 %v1485, %v457
        %v1489 = vmul.f32 %v1486, %v461
        %v1490 = vpack.c.bf16 %v1487, %v1487
        %v1491 = vpack.c.bf16 %v1488, %v1488
        %v1492 = vpack.c.bf16 %v1489, %v1489
        %v1496 = vunpack.c.l.b16 %v1490
        %v1497 = vunpack.c.l.b16 %v1491
        %v1498 = vunpack.c.l.b16 %v1492
        %v1499 = vpack.c.b16 %v1497, %v1496
        %v1500 = vpack.c.b16 %v1498, %v1498
        %1503 = vst [vmem:[%s309] sm:$0xff] %v1499
        %1504 = vst.msk [vmem:[%s309 + $0x8] sm:$0xf] %vm482, %v1500
        %v1505 = vadd.f32 %v1487, %v1488
        %vm1506 = vcmask 523264
        %v1507 = vsel %vm1506, %v1489, 0.0
        %v1508 = vadd.f32 %v1505, %v1507
        %1509 = vadd.xlane.f32.xlu0 %v1508
        %v1510 = vpop.xlane.xlu0 %1509
        %v1511 = vmul.f32 %v1487, %v1487
        %v1512 = vmul.f32 %v1488, %v1488
        %v1513 = vmul.f32 %v1489, %v1489
        %v1514 = vadd.f32 %v1511, %v1512
        %v1515 = vsel %vm1506, %v1513, 0.0
        %v1516 = vadd.f32 %v1514, %v1515
        %1517 = vadd.xlane.f32.xlu0 %v1516
        %v1518 = vpop.xlane.xlu0 %1517
        %vm1519 = vcmask 7168
        %v1520 = vsel %vm1519, %v1510, %v1518
        %vm1521 = vcmask 15360
        %1522 = vst.msk [vmem:[%s324] sm:$0xff] %vm1521, %v1520
        %s1523 = sand.u32 %s165, 1
        %s1524 = scalar_lea.sflag [#allocation4], %s1523
        %s1525 = sand.u32 %s165, 1
        %s1526 = smul.addr %s1525, 12
        %s1527 = scalar_lea.vmem [#allocation3], %s1526
        %s1528 = sand.u32 %s191, 1
        %s1529 = scalar_lea.sflag [#allocation6], %s1528
        %s1530 = sand.u32 %s191, 1
        %s1531 = smul.addr %s1530, 12
        %s1532 = scalar_lea.vmem [#allocation5], %s1531
        %p1533 = scmp.lt.s32.totalorder %s26, 1
        %s1534 = scalar_select %p1533, %s26, 1
        %s1535 = smul.addr %s1534, 8
        %s1536 = scalar_lea.vmem %s8, %s1535
        // Predicated region
        $region45: #{tpu_custom_call.1} parent=43 // pred_check
          %p1537 = pneg %p175
        $region46: #{tpu_custom_call.1} parent=43 // pred_check_branch
          %1539 = sbr.rel (%p1537) target = $region48
        $region47: #{tpu_custom_call.1} parent=43 // pred_region
          %s1541 = ssub.s32 192, 192
          %1542 = vsyncadd %s1524, %s1541
          %s1543 = smul.addr %s26, 3
          %s1544 = smul.addr %s1543, 64
          %s1545 = scalar_lea.hbm %s6, %s1544
          %s1547 = sshll.u32 %s1527, 4
          %s1548 = int_to_ptr.vmem [resolvable:$true] %s1547
          %1550 = dma.vmem_to_hbm [thread:$0]  %s1548, 192, %s1545, %s1524
        $region48: #{tpu_custom_call.1} parent=43 // pred_fallthru
          _
        // Predicated region
        $region49: #{tpu_custom_call.1} parent=43 // pred_check
          %p1551 = pneg %p201
        $region50: #{tpu_custom_call.1} parent=43 // pred_check_branch
          %1553 = sbr.rel (%p1551) target = $region52
        $region51: #{tpu_custom_call.1} parent=43 // pred_region
          %s1555 = ssub.s32 192, 192
          %1556 = vsyncadd %s1529, %s1555
          %s1557 = smul.addr %s26, 3
          %s1558 = smul.addr %s1557, 64
          %s1559 = scalar_lea.hbm %s7, %s1558
          %s1561 = sshll.u32 %s1532, 4
          %s1562 = int_to_ptr.vmem [resolvable:$true] %s1561
          %1564 = dma.vmem_to_hbm [thread:$0]  %s1562, 192, %s1559, %s1529
        $region52: #{tpu_custom_call.1} parent=43 // pred_fallthru
          _
        // Predicated region
        $region53: #{tpu_custom_call.1} parent=43 // pred_check
          %p1565 = pneg %p227
        $region54: #{tpu_custom_call.1} parent=43 // pred_check_branch
          %1567 = sbr.rel (%p1565) target = $region56
        $region55: #{tpu_custom_call.1} parent=43 // pred_region
          _
        $region56: #{tpu_custom_call.1} parent=43 // pred_fallthru
          _
      $region44: #{tpu_custom_call.1} parent=5 // pred_fallthru
        _
      %p1568 = scmp.le.s32.totalorder 2, %s21
      // Predicated region
      $region57: #{tpu_custom_call.1} parent=5 // pred_check
        %p1569 = pneg %p1568
      $region58: #{tpu_custom_call.1} parent=5 // pred_check_branch
        %1571 = sbr.rel (%p1569) target = $region60
      $region59: #{tpu_custom_call.1} parent=5 // pred_region
        %s1572 = ssub.s32 %s21, 2
        // Predicated region
        $region61: #{tpu_custom_call.1} parent=59 // pred_check
          %p1573 = pneg %p181
        $region62: #{tpu_custom_call.1} parent=59 // pred_check_branch
          %1575 = sbr.rel (%p1573) target = $region64
        $region63: #{tpu_custom_call.1} parent=59 // pred_region
          %s1576 = sand.u32 %s166, 1
          %s1577 = scalar_lea.sflag [#allocation4], %s1576
          %s1578 = sand.u32 %s166, 1
          %s1579 = smul.addr %s1578, 12
          %s1580 = scalar_lea.vmem [#allocation3], %s1579
          %1581 = dma.done %s1577, 192
        $region64: #{tpu_custom_call.1} parent=59 // pred_fallthru
          _
        // Predicated region
        $region65: #{tpu_custom_call.1} parent=59 // pred_check
          %p1582 = pneg %p207
        $region66: #{tpu_custom_call.1} parent=59 // pred_check_branch
          %1584 = sbr.rel (%p1582) target = $region68
        $region67: #{tpu_custom_call.1} parent=59 // pred_region
          %s1585 = sand.u32 %s192, 1
          %s1586 = scalar_lea.sflag [#allocation6], %s1585
          %s1587 = sand.u32 %s192, 1
          %s1588 = smul.addr %s1587, 12
          %s1589 = scalar_lea.vmem [#allocation5], %s1588
          %1590 = dma.done %s1586, 192
        $region68: #{tpu_custom_call.1} parent=59 // pred_fallthru
          _
        // Predicated region
        $region69: #{tpu_custom_call.1} parent=59 // pred_check
          %p1591 = pneg %p233
        $region70: #{tpu_custom_call.1} parent=59 // pred_check_branch
          %1593 = sbr.rel (%p1591) target = $region72
        $region71: #{tpu_custom_call.1} parent=59 // pred_region
          %p1594 = scmp.lt.s32.totalorder %s27, 1
          %s1595 = scalar_select %p1594, %s27, 1
          %s1596 = smul.addr %s1595, 8
          %s1597 = scalar_lea.vmem %s8, %s1596
        $region72: #{tpu_custom_call.1} parent=59 // pred_fallthru
          _
      $region60: #{tpu_custom_call.1} parent=5 // pred_fallthru
        _
    $region6: #{tpu_custom_call.1} parent=1 // loop_footer
      %s25 = sadd.s32 1, %s21
    $region7: #{tpu_custom_call.1} parent=1 // loop_footer_branch
      %20 = sbr.rel target = $region3
    $region8: #{tpu_custom_call.1} parent=1 // loop_exit
      _
    %1598 = vsyncpa [#allocation4], 1
    %s1599 = scalar_lea.sflag [#allocation4], 1
    %1600 = vsyncpa %s1599, 1
    %1601 = vsyncpa [#allocation6], 1
    %s1602 = scalar_lea.sflag [#allocation6], 1
    %1603 = vsyncpa %s1602, 1

</llo_original>
